<compile_context>
chip_gen: v5e
topology: v5e:2x2
jax: 0.10.0
libtpu: 0.0.40
codegen_flags: <defaults>
</compile_context>

<pallas_src>
import jax
import jax.numpy as jnp
from jax.experimental import pallas as pl
from jax.experimental.pallas import tpu as pltpu

NEG_INF = float("-inf")


def _round_up(x, m):
    return (x + m - 1) // m * m


# ----------------------------- Pallas kernel -------------------------------- #
def _hangman_head_kernel(seq_ref, gb_ref, g_ref, w1h_ref, w2_ref, b2_ref, out_ref):
    # Per grid step (batch b, row-tile k) over compacted mask-token rows.
    #   seq_ref (1,TM,H) bf16 : compacted mask-token rows of the encoder output
    #   gb_ref  (1,1,Fp) f32  : guessed @ W1[H:] + b1 (precomputed per batch)
    #   g_ref   (1,1,Vp) f32  : guessed-letter indicator (0/1), lane-padded
    #   w1h_ref (H,Fp)  bf16  : fc weight, hidden part   (constant over grid)
    #   w2_ref  (Fp,Vp) bf16  : output weight            (constant over grid)
    #   b2_ref  (1,Vp)  f32   : output bias              (constant over grid)
    #   out_ref (1,1,Vp) f32  : running max, resident across the k axis
    k = pl.program_id(1)

    @pl.when(k == 0)
    def _init():
        out_ref[...] = jnp.full(out_ref.shape, NEG_INF, dtype=out_ref.dtype)

    x = seq_ref[0]                                               # [TM, H] bf16
    # fc(concat(x, guessed)) == x @ W1[:H] + (guessed @ W1[H:] + b1); the second
    # term is the precomputed gb.  (dropout p=0.2 is identity in eval mode.)
    h = jnp.dot(x, w1h_ref[...], preferred_element_type=jnp.float32) + gb_ref[0]
    h = jnp.maximum(h, 0.0)                                      # ReLU -> [TM, Fp]
    s = jnp.dot(h.astype(jnp.bfloat16), w2_ref[...],
                preferred_element_type=jnp.float32)              # [TM, Vp]

    # Running max over mask-token row tiles (accumulator pattern).
    out_ref[0] = jnp.maximum(out_ref[0], jnp.max(s, axis=0, keepdims=True))

    @pl.when(k == pl.num_programs(1) - 1)
    def _finalize():
        # b2 and the guessed-letter mask are constant over the sequence, so they
        # are applied once post-max; b2 is finite => -inf rows stay -inf.
        res = out_ref[0] + b2_ref[...]
        out_ref[0] = jnp.where(g_ref[0] > 0.5, NEG_INF, res)


# ------------------------------- host wrapper -------------------------------- #
def hangman_head(seq_out, guessed, mask_tok, w1, b1, w2, b2, *,
                 lane=128, row_tile=256, max_masks=None):
    """seq_out [B,S,H] (bf16/f32), guessed [B,V] 0/1, mask_tok [B,S] bool -> [B,V] f32."""
    B, S, H = seq_out.shape
    V = guessed.shape[-1]
    F = w1.shape[-1]
    Fp = _round_up(F, lane)       # lane-align fc width   (328 -> 384 at prod size)
    Vp = _round_up(V, lane)       # lane-align vocab width (26 -> 128)

    bf = jnp.bfloat16
    seq_bf = seq_out if seq_out.dtype == bf else seq_out.astype(bf)

    # ---- mask-token sparsity: compact the rows that can survive the max. ----
    if max_masks is None:
        max_masks = S  # TODO(synk): at prod use a budget << S (hangman words are short).
    n_mask = jnp.sum(mask_tok.astype(jnp.int32), axis=1)                     # [B]
    order = jnp.argsort(jnp.logical_not(mask_tok), axis=1, stable=True)      # mask rows first
    Mp = _round_up(max(int(max_masks), 1), 8)
    TM = min(row_tile, Mp)        # M tile: 256 suits v6e/v7x MXU; 128 is enough on v5e
    Mp = _round_up(Mp, TM)
    j = jnp.arange(Mp)
    order_ext = jnp.take(order, jnp.minimum(j, S - 1), axis=1)               # [B, Mp]
    # Pad with duplicates of the first mask row — duplicates cannot change the max.
    row_idx = jnp.where(j[None, :] < n_mask[:, None], order_ext, order_ext[:, :1])
    seq_c = jnp.take_along_axis(seq_bf, row_idx[:, :, None], axis=1)         # [B, Mp, H] bf16

    # ---- weights: split fc into hidden/guessed parts, lane-pad, bf16 matmul inputs.
    w1h = jnp.zeros((H, Fp), bf).at[:, :F].set(w1[:H].astype(bf))
    w2p = jnp.zeros((Fp, Vp), bf).at[:F, :V].set(w2.astype(bf))
    b2p = jnp.zeros((1, Vp), jnp.float32).at[:, :V].set(b2.astype(jnp.float32))

    # gb = guessed @ W1[H:] + b1 once per batch (was a degenerate M=1 in-kernel
    # matmul).  Padded columns of gb / w1h / w2p are exactly zero.
    gb = jnp.dot(guessed.astype(bf), w1[H:].astype(bf),
                 preferred_element_type=jnp.float32) + b1.astype(jnp.float32)  # [B, F]
    gb3 = jnp.zeros((B, 1, Fp), jnp.float32).at[:, 0, :F].set(gb)
    guessed3 = jnp.zeros((B, 1, Vp), jnp.float32).at[:, 0, :V].set(
        guessed.astype(jnp.float32))

    def call(single_buffer_consts):
        # Constant-over-grid weights never change block index -> single-buffer them.
        const_kw = {"pipeline_mode": pl.Buffered(1)} if single_buffer_consts else {}
        return pl.pallas_call(
            _hangman_head_kernel,
            out_shape=jax.ShapeDtypeStruct((B, 1, Vp), jnp.float32),
            grid_spec=pltpu.PrefetchScalarGridSpec(
                num_scalar_prefetch=0,
                grid=(B, Mp // TM),                    # reduction (row-tile) axis last
                in_specs=[
                    pl.BlockSpec((1, TM, H), lambda b, k: (b, k, 0)),   # compacted seq rows
                    pl.BlockSpec((1, 1, Fp), lambda b, k: (b, 0, 0)),   # gb (per batch)
                    pl.BlockSpec((1, 1, Vp), lambda b, k: (b, 0, 0)),   # guessed letters
                    pl.BlockSpec((H, Fp), lambda b, k: (0, 0), **const_kw),   # fc weight (hidden)
                    pl.BlockSpec((Fp, Vp), lambda b, k: (0, 0), **const_kw),  # output weight
                    pl.BlockSpec((1, Vp), lambda b, k: (0, 0), **const_kw),   # output bias
                ],
                out_specs=pl.BlockSpec((1, 1, Vp), lambda b, k: (b, 0, 0)),
            ),
            # TODO(synk): at prod (H=768, >=1024-row tiles) set vmem_limit_bytes —
            # v5e scoped default is 16 MiB; keep the working set < v7x's 64 MiB VMEM.
            compiler_params=pltpu.CompilerParams(
                dimension_semantics=("parallel", "arbitrary")),
        )(seq_c, gb3, guessed3, w1h, w2p, b2p)

    try:
        out = call(True)
    except Exception:          # pragma: no cover — jax without Buffered(1) support
        out = call(False)

    out = out.reshape(B, Vp)
    # Batch rows with zero mask tokens are all -inf (matches the reference).
    out = jnp.where(n_mask[:, None] > 0, out, NEG_INF)
    return out[:, :V]


# -------------------- synthetic BERT stand-in (plain JAX glue) --------------- #
# TODO(synk): the pretrained bert-base-uncased encoder (frozen, hidden=768) is
# replaced by a deterministic single-layer stand-in with a small hidden size.
def _layer_norm(x, g, b, eps=1e-12):
    mu = jnp.mean(x, axis=-1, keepdims=True)
    var = jnp.var(x, axis=-1, keepdims=True)
    return (x - mu) * jax.lax.rsqrt(var + eps) * g + b


def synthetic_bert(p, input_ids, attention_mask):
    tok = p["tok_emb"][input_ids]                               # [B,S,H]
    pos = p["pos_emb"][None, : input_ids.shape[1]]              # [1,S,H]
    x = _layer_norm(tok + pos, p["ln0_g"], p["ln0_b"])
    q, k, v = x @ p["wq"], x @ p["wk"], x @ p["wv"]
    scores = jnp.einsum("bqd,bkd->bqk", q, k) / jnp.sqrt(q.shape[-1]).astype(jnp.float32)
    scores = jnp.where(attention_mask[:, None, :] > 0, scores, -1e9)
    attn = jax.nn.softmax(scores, axis=-1)
    ctx = jnp.einsum("bqk,bkd->bqd", attn, v) @ p["wo"]
    x = _layer_norm(x + ctx, p["ln1_g"], p["ln1_b"])
    ff = jax.nn.gelu(x @ p["w_ff1"]) @ p["w_ff2"]
    x = _layer_norm(x + ff, p["ln2_g"], p["ln2_b"])
    # Emit bf16 directly (cast fuses into the encoder's last op) so no standalone
    # wrapper cast of the largest tensor is needed before the head kernel.
    return x.astype(jnp.bfloat16)                               # last_hidden_state


# ----------------------------- pure-JAX reference ---------------------------- #
# Matches the kernel's precision choices (bf16 matmul inputs, f32 accumulation)
# so the correctness check can stay tight.
def head_ref(seq, guessed, mask_tok, w1, b1, w2, b2):
    bf = jnp.bfloat16
    B, S, H = seq.shape
    g_rep = jnp.repeat(guessed[:, None, :], S, axis=1)
    x = jnp.concatenate([seq.astype(jnp.float32), g_rep], axis=-1).astype(bf)
    h = jax.nn.relu(jnp.dot(x, w1.astype(bf),
                            preferred_element_type=jnp.float32) + b1)
    logits = jnp.dot(h.astype(bf), w2.astype(bf),
                     preferred_element_type=jnp.float32) + b2
    logits = jnp.where(g_rep > 0.5, NEG_INF, logits)
    logits = jnp.where(mask_tok[..., None], logits, NEG_INF)
    return jnp.max(logits, axis=1)


# ------------------------------------ main ----------------------------------- #
if __name__ == "__main__":
    B, S = 2, 8
    H = 32            # stand-in for BERT hidden 768
    V = 26            # vocab_size (letters)
    FC = 48           # stand-in for hidden_size=328
    TOKEN_VOCAB = 128
    MASK_TOKEN_ID = 103  # bert_tokenizer.mask_token_id

    key = jax.random.PRNGKey(0)
    ks = jax.random.split(key, 16)

    # Inputs.
    input_ids = jax.random.randint(ks[0], (B, S), 0, TOKEN_VOCAB)
    input_ids = (input_ids.at[0, 2].set(MASK_TOKEN_ID)
                          .at[0, 5].set(MASK_TOKEN_ID)
                          .at[1, 1].set(MASK_TOKEN_ID))
    attention_mask = jnp.ones((B, S), jnp.int32)
    guessed_letters = (jax.random.uniform(ks[1], (B, V)) < 0.3).astype(jnp.float32)

    # Synthetic BERT parameters (deterministic).
    bert_params = {
        "tok_emb": 0.02 * jax.random.normal(ks[2], (TOKEN_VOCAB, H), jnp.float32),
        "pos_emb": 0.02 * jax.random.normal(ks[3], (S, H), jnp.float32),
        "ln0_g": jnp.ones((H,), jnp.float32), "ln0_b": jnp.zeros((H,), jnp.float32),
        "wq": 0.05 * jax.random.normal(ks[4], (H, H), jnp.float32),
        "wk": 0.05 * jax.random.normal(ks[5], (H, H), jnp.float32),
        "wv": 0.05 * jax.random.normal(ks[6], (H, H), jnp.float32),
        "wo": 0.05 * jax.random.normal(ks[7], (H, H), jnp.float32),
        "ln1_g": jnp.ones((H,), jnp.float32), "ln1_b": jnp.zeros((H,), jnp.float32),
        "w_ff1": 0.05 * jax.random.normal(ks[8], (H, 4 * H), jnp.float32),
        "w_ff2": 0.05 * jax.random.normal(ks[9], (4 * H, H), jnp.float32),
        "ln2_g": jnp.ones((H,), jnp.float32), "ln2_b": jnp.zeros((H,), jnp.float32),
    }

    # Head parameters: fc: Linear(H+V, FC), output: Linear(FC, V).
    w1 = 0.05 * jax.random.normal(ks[10], (H + V, FC), jnp.float32)
    b1 = 0.01 * jax.random.normal(ks[11], (FC,), jnp.float32)
    w2 = 0.05 * jax.random.normal(ks[12], (FC, V), jnp.float32)
    b2 = 0.01 * jax.random.normal(ks[13], (V,), jnp.float32)

    # Forward.
    sequence_output = synthetic_bert(bert_params, input_ids, attention_mask)  # [B,S,H] bf16
    mask_tok = (input_ids == MASK_TOKEN_ID)                                   # [B,S] bool

    out = hangman_head(sequence_output, guessed_letters, mask_tok, w1, b1, w2, b2)
    out = jax.block_until_ready(out)

    # Correctness check against the (precision-matched) pure-JAX reference.
    ref = head_ref(sequence_output, guessed_letters, mask_tok, w1, b1, w2, b2)
    finite = jnp.isfinite(ref)
    ok = bool(jnp.all(jnp.where(finite, jnp.abs(ref - out) < 5e-3, out == ref)))
    assert ok, "Pallas kernel output does not match reference"
    print("KERNEL_OK")
</pallas_src>

<mosaic_0001>
module attributes {stable_mosaic.version = 11 : i64} {
  func.func @_hangman_head_kernel(%arg0: i32, %arg1: i32, %arg2: memref<1x8x32xbf16, #tpu.memory_space<vmem>>, %arg3: memref<1x1x128xf32, #tpu.memory_space<vmem>>, %arg4: memref<1x1x128xf32, #tpu.memory_space<vmem>>, %arg5: memref<32x128xbf16, #tpu.memory_space<vmem>>, %arg6: memref<128x128xbf16, #tpu.memory_space<vmem>>, %arg7: memref<1x128xf32, #tpu.memory_space<vmem>>, %arg8: memref<1x1x128xf32, #tpu.memory_space<vmem>>) attributes {dimension_semantics = [#tpu.dimension_semantics<parallel>, #tpu.dimension_semantics<arbitrary>], iteration_bounds = array<i64: 2, 1>, scalar_prefetch = 0 : i64, scratch_operands = 0 : i64, tpu.core_type = #tpu.core_type<tc>, window_params = [{transform_indices = @transform_0, window_bounds = array<i64: 1, 8, 32>}, {transform_indices = @transform_1, window_bounds = array<i64: 1, 1, 128>}, {transform_indices = @transform_2, window_bounds = array<i64: 1, 1, 128>}, {pipeline_mode = #tpu.pipeline_mode<synchronous>, transform_indices = @transform_3, window_bounds = array<i64: 32, 128>}, {pipeline_mode = #tpu.pipeline_mode<synchronous>, transform_indices = @transform_4, window_bounds = array<i64: 128, 128>}, {pipeline_mode = #tpu.pipeline_mode<synchronous>, transform_indices = @transform_5, window_bounds = array<i64: 1, 128>}, {transform_indices = @transform_6, window_bounds = array<i64: 1, 1, 128>}]} {
    %c0_i32 = arith.constant 0 : i32
    %0 = arith.cmpi eq, %arg1, %c0_i32 : i32
    %1 = arith.extui %0 : i1 to i32
    %c0_i32_0 = arith.constant 0 : i32
    %2 = arith.cmpi ne, %1, %c0_i32_0 : i32
    scf.if %2 {
      %cst_21 = arith.constant 0xFF800000 : f32
      %27 = vector.broadcast %cst_21 : f32 to vector<1x1x128xf32>
      %c0_22 = arith.constant 0 : index
      %c0_23 = arith.constant 0 : index
      %c0_24 = arith.constant 0 : index
      %28 = vector.load %arg8[%c0_22, %c0_23, %c0_24] : memref<1x1x128xf32, #tpu.memory_space<vmem>>, vector<1x1x128xf32>
      tpu.vector_store %arg8[%c0_22, %c0_23, %c0_24], %27 {strides = array<i32>} : memref<1x1x128xf32, #tpu.memory_space<vmem>>, vector<1x1x128xf32>,
    } else {
    }
    %c0 = arith.constant 0 : index
    %c0_1 = arith.constant 0 : index
    %c0_2 = arith.constant 0 : index
    %3 = vector.load %arg2[%c0, %c0_1, %c0_2] : memref<1x8x32xbf16, #tpu.memory_space<vmem>>, vector<1x8x32xbf16>
    %4 = vector.shape_cast %3 : vector<1x8x32xbf16> to vector<8x32xbf16>
    %c0_3 = arith.constant 0 : index
    %c0_4 = arith.constant 0 : index
    %5 = vector.load %arg5[%c0_3, %c0_4] : memref<32x128xbf16, #tpu.memory_space<vmem>>, vector<32x128xbf16>
    %cst = arith.constant dense<0.000000e+00> : vector<8x128xf32>
    %6 = tpu.matmul %4, %5, %cst {dimension_numbers = #tpu.dot_dimension_numbers<[1], [0], [0], [1], [0, 0, 1, 1], [], []>} : vector<8x32xbf16>, vector<32x128xbf16>, vector<8x128xf32> -> vector<8x128xf32>
    %c0_5 = arith.constant 0 : index
    %c0_6 = arith.constant 0 : index
    %c0_7 = arith.constant 0 : index
    %7 = vector.load %arg3[%c0_5, %c0_6, %c0_7] : memref<1x1x128xf32, #tpu.memory_space<vmem>>, vector<1x1x128xf32>
    %8 = vector.shape_cast %7 : vector<1x1x128xf32> to vector<1x128xf32>
    %9 = vector.broadcast %8 : vector<1x128xf32> to vector<8x128xf32>
    %10 = arith.addf %6, %9 : vector<8x128xf32>
    %cst_8 = arith.constant 0.000000e+00 : f32
    %11 = vector.broadcast %cst_8 : f32 to vector<8x128xf32>
    %12 = arith.maximumf %10, %11 : vector<8x128xf32>
    %13 = arith.truncf %12 : vector<8x128xf32> to vector<8x128xbf16>
    %c0_9 = arith.constant 0 : index
    %c0_10 = arith.constant 0 : index
    %14 = vector.load %arg6[%c0_9, %c0_10] : memref<128x128xbf16, #tpu.memory_space<vmem>>, vector<128x128xbf16>
    %cst_11 = arith.constant dense<0.000000e+00> : vector<8x128xf32>
    %15 = tpu.matmul %13, %14, %cst_11 {dimension_numbers = #tpu.dot_dimension_numbers<[1], [0], [0], [1], [0, 0, 1, 1], [], []>} : vector<8x128xbf16>, vector<128x128xbf16>, vector<8x128xf32> -> vector<8x128xf32>
    %c0_12 = arith.constant 0 : index
    %c0_13 = arith.constant 0 : index
    %c0_14 = arith.constant 0 : index
    %16 = vector.load %arg8[%c0_12, %c0_13, %c0_14] : memref<1x1x128xf32, #tpu.memory_space<vmem>>, vector<1x1x128xf32>
    %17 = vector.shape_cast %16 : vector<1x1x128xf32> to vector<1x128xf32>
    %cst_15 = arith.constant dense<0xFF800000> : vector<128xf32>
    %18 = vector.multi_reduction <maximumf>, %15, %cst_15 [0] : vector<8x128xf32> to vector<128xf32>
    %19 = vector.shape_cast %18 : vector<128xf32> to vector<1x128xf32>
    %20 = arith.maximumf %17, %19 : vector<1x128xf32>
    %c0_16 = arith.constant 0 : index
    %c0_17 = arith.constant 0 : index
    %c0_18 = arith.constant 0 : index
    %21 = vector.load %arg8[%c0_16, %c0_17, %c0_18] : memref<1x1x128xf32, #tpu.memory_space<vmem>>, vector<1x1x128xf32>
    %22 = vector.shape_cast %21 : vector<1x1x128xf32> to vector<1x128xf32>
    %23 = vector.shape_cast %20 : vector<1x128xf32> to vector<1x1x128xf32>
    tpu.vector_store %arg8[%c0_16, %c0_17, %c0_18], %23 {strides = array<i32>} : memref<1x1x128xf32, #tpu.memory_space<vmem>>, vector<1x1x128xf32>,
    %c0_i32_19 = arith.constant 0 : i32
    %24 = arith.cmpi eq, %arg1, %c0_i32_19 : i32
    %25 = arith.extui %24 : i1 to i32
    %c0_i32_20 = arith.constant 0 : i32
    %26 = arith.cmpi ne, %25, %c0_i32_20 : i32
    scf.if %26 {
      %c0_21 = arith.constant 0 : index
      %c0_22 = arith.constant 0 : index
      %c0_23 = arith.constant 0 : index
      %27 = vector.load %arg8[%c0_21, %c0_22, %c0_23] : memref<1x1x128xf32, #tpu.memory_space<vmem>>, vector<1x1x128xf32>
      %28 = vector.shape_cast %27 : vector<1x1x128xf32> to vector<1x128xf32>
      %c0_24 = arith.constant 0 : index
      %c0_25 = arith.constant 0 : index
      %29 = vector.load %arg7[%c0_24, %c0_25] : memref<1x128xf32, #tpu.memory_space<vmem>>, vector<1x128xf32>
      %30 = arith.addf %28, %29 : vector<1x128xf32>
      %c0_26 = arith.constant 0 : index
      %c0_27 = arith.constant 0 : index
      %c0_28 = arith.constant 0 : index
      %31 = vector.load %arg4[%c0_26, %c0_27, %c0_28] : memref<1x1x128xf32, #tpu.memory_space<vmem>>, vector<1x1x128xf32>
      %32 = vector.shape_cast %31 : vector<1x1x128xf32> to vector<1x128xf32>
      %cst_29 = arith.constant 5.000000e-01 : f32
      %33 = vector.broadcast %cst_29 : f32 to vector<1x128xf32>
      %34 = arith.cmpf ogt, %32, %33 : vector<1x128xf32>
      %cst_30 = arith.constant 0xFF800000 : f32
      %35 = vector.broadcast %cst_30 : f32 to vector<1x128xf32>
      %36 = arith.select %34, %35, %30 : vector<1x128xi1>, vector<1x128xf32>
      %c0_31 = arith.constant 0 : index
      %c0_32 = arith.constant 0 : index
      %c0_33 = arith.constant 0 : index
      %37 = vector.load %arg8[%c0_31, %c0_32, %c0_33] : memref<1x1x128xf32, #tpu.memory_space<vmem>>, vector<1x1x128xf32>
      %38 = vector.shape_cast %37 : vector<1x1x128xf32> to vector<1x128xf32>
      %39 = vector.shape_cast %36 : vector<1x128xf32> to vector<1x1x128xf32>
      tpu.vector_store %arg8[%c0_31, %c0_32, %c0_33], %39 {strides = array<i32>} : memref<1x1x128xf32, #tpu.memory_space<vmem>>, vector<1x1x128xf32>,
    } else {
    }
    return
  }
  func.func @transform_0(%arg0: i32, %arg1: i32) -> (i32, i32, i32) {
    %c0_i32 = arith.constant 0 : i32
    %c0_i32_0 = arith.constant 0 : i32
    return %arg0, %arg1, %c0_i32 : i32, i32, i32
  }
  func.func @transform_1(%arg0: i32, %arg1: i32) -> (i32, i32, i32) {
    %c0_i32 = arith.constant 0 : i32
    %c0_i32_0 = arith.constant 0 : i32
    %c0_i32_1 = arith.constant 0 : i32
    return %arg0, %c0_i32, %c0_i32_0 : i32, i32, i32
  }
  func.func @transform_2(%arg0: i32, %arg1: i32) -> (i32, i32, i32) {
    %c0_i32 = arith.constant 0 : i32
    %c0_i32_0 = arith.constant 0 : i32
    %c0_i32_1 = arith.constant 0 : i32
    return %arg0, %c0_i32, %c0_i32_0 : i32, i32, i32
  }
  func.func @transform_3(%arg0: i32, %arg1: i32) -> (i32, i32) {
    %c0_i32 = arith.constant 0 : i32
    %c0_i32_0 = arith.constant 0 : i32
    %c0_i32_1 = arith.constant 0 : i32
    return %c0_i32, %c0_i32_0 : i32, i32
  }
  func.func @transform_4(%arg0: i32, %arg1: i32) -> (i32, i32) {
    %c0_i32 = arith.constant 0 : i32
    %c0_i32_0 = arith.constant 0 : i32
    %c0_i32_1 = arith.constant 0 : i32
    return %c0_i32, %c0_i32_0 : i32, i32
  }
  func.func @transform_5(%arg0: i32, %arg1: i32) -> (i32, i32) {
    %c0_i32 = arith.constant 0 : i32
    %c0_i32_0 = arith.constant 0 : i32
    %c0_i32_1 = arith.constant 0 : i32
    return %c0_i32, %c0_i32_0 : i32, i32
  }
  func.func @transform_6(%arg0: i32, %arg1: i32) -> (i32, i32, i32) {
    %c0_i32 = arith.constant 0 : i32
    %c0_i32_0 = arith.constant 0 : i32
    %c0_i32_1 = arith.constant 0 : i32
    return %arg0, %c0_i32, %c0_i32_0 : i32, i32, i32
  }
}

module attributes {stable_mosaic.version = 11 : i64} {
  func.func @_hangman_head_kernel(%arg0: i32, %arg1: i32, %arg2: memref<1x8x32xbf16, #tpu.memory_space<vmem>>, %arg3: memref<1x1x128xf32, #tpu.memory_space<vmem>>, %arg4: memref<1x1x128xf32, #tpu.memory_space<vmem>>, %arg5: memref<32x128xbf16, #tpu.memory_space<vmem>>, %arg6: memref<128x128xbf16, #tpu.memory_space<vmem>>, %arg7: memref<1x128xf32, #tpu.memory_space<vmem>>, %arg8: memref<1x1x128xf32, #tpu.memory_space<vmem>>) attributes {dimension_semantics = [#tpu.dimension_semantics<parallel>, #tpu.dimension_semantics<arbitrary>], iteration_bounds = array<i64: 2, 1>, scalar_prefetch = 0 : i64, scratch_operands = 0 : i64, tpu.core_type = #tpu.core_type<tc>, window_params = [{transform_indices = @transform_0, window_bounds = array<i64: 1, 8, 32>}, {transform_indices = @transform_1, window_bounds = array<i64: 1, 1, 128>}, {transform_indices = @transform_2, window_bounds = array<i64: 1, 1, 128>}, {pipeline_mode = #tpu.pipeline_mode<synchronous>, transform_indices = @transform_3, window_bounds = array<i64: 32, 128>}, {pipeline_mode = #tpu.pipeline_mode<synchronous>, transform_indices = @transform_4, window_bounds = array<i64: 128, 128>}, {pipeline_mode = #tpu.pipeline_mode<synchronous>, transform_indices = @transform_5, window_bounds = array<i64: 1, 128>}, {transform_indices = @transform_6, window_bounds = array<i64: 1, 1, 128>}]} {
    %c0_i32 = arith.constant 0 : i32
    %0 = arith.cmpi eq, %arg1, %c0_i32 : i32
    %1 = arith.extui %0 : i1 to i32
    %c0_i32_0 = arith.constant 0 : i32
    %2 = arith.cmpi ne, %1, %c0_i32_0 : i32
    scf.if %2 {
      %cst_21 = arith.constant 0xFF800000 : f32
      %27 = vector.broadcast %cst_21 : f32 to vector<1x1x128xf32>
      %c0_22 = arith.constant 0 : index
      %c0_23 = arith.constant 0 : index
      %c0_24 = arith.constant 0 : index
      %28 = vector.load %arg8[%c0_22, %c0_23, %c0_24] : memref<1x1x128xf32, #tpu.memory_space<vmem>>, vector<1x1x128xf32>
      tpu.vector_store %arg8[%c0_22, %c0_23, %c0_24], %27 {strides = array<i32>} : memref<1x1x128xf32, #tpu.memory_space<vmem>>, vector<1x1x128xf32>,
    } else {
    }
    %c0 = arith.constant 0 : index
    %c0_1 = arith.constant 0 : index
    %c0_2 = arith.constant 0 : index
    %3 = vector.load %arg2[%c0, %c0_1, %c0_2] : memref<1x8x32xbf16, #tpu.memory_space<vmem>>, vector<1x8x32xbf16>
    %4 = vector.shape_cast %3 : vector<1x8x32xbf16> to vector<8x32xbf16>
    %c0_3 = arith.constant 0 : index
    %c0_4 = arith.constant 0 : index
    %5 = vector.load %arg5[%c0_3, %c0_4] : memref<32x128xbf16, #tpu.memory_space<vmem>>, vector<32x128xbf16>
    %cst = arith.constant dense<0.000000e+00> : vector<8x128xf32>
    %6 = tpu.matmul %4, %5, %cst {dimension_numbers = #tpu.dot_dimension_numbers<[1], [0], [0], [1], [0, 0, 1, 1], [], []>} : vector<8x32xbf16>, vector<32x128xbf16>, vector<8x128xf32> -> vector<8x128xf32>
    %c0_5 = arith.constant 0 : index
    %c0_6 = arith.constant 0 : index
    %c0_7 = arith.constant 0 : index
    %7 = vector.load %arg3[%c0_5, %c0_6, %c0_7] : memref<1x1x128xf32, #tpu.memory_space<vmem>>, vector<1x1x128xf32>
    %8 = vector.shape_cast %7 : vector<1x1x128xf32> to vector<1x128xf32>
    %9 = vector.broadcast %8 : vector<1x128xf32> to vector<8x128xf32>
    %10 = arith.addf %6, %9 : vector<8x128xf32>
    %cst_8 = arith.constant 0.000000e+00 : f32
    %11 = vector.broadcast %cst_8 : f32 to vector<8x128xf32>
    %12 = arith.maximumf %10, %11 : vector<8x128xf32>
    %13 = arith.truncf %12 : vector<8x128xf32> to vector<8x128xbf16>
    %c0_9 = arith.constant 0 : index
    %c0_10 = arith.constant 0 : index
    %14 = vector.load %arg6[%c0_9, %c0_10] : memref<128x128xbf16, #tpu.memory_space<vmem>>, vector<128x128xbf16>
    %cst_11 = arith.constant dense<0.000000e+00> : vector<8x128xf32>
    %15 = tpu.matmul %13, %14, %cst_11 {dimension_numbers = #tpu.dot_dimension_numbers<[1], [0], [0], [1], [0, 0, 1, 1], [], []>} : vector<8x128xbf16>, vector<128x128xbf16>, vector<8x128xf32> -> vector<8x128xf32>
    %c0_12 = arith.constant 0 : index
    %c0_13 = arith.constant 0 : index
    %c0_14 = arith.constant 0 : index
    %16 = vector.load %arg8[%c0_12, %c0_13, %c0_14] : memref<1x1x128xf32, #tpu.memory_space<vmem>>, vector<1x1x128xf32>
    %17 = vector.shape_cast %16 : vector<1x1x128xf32> to vector<1x128xf32>
    %cst_15 = arith.constant dense<0xFF800000> : vector<128xf32>
    %18 = vector.multi_reduction <maximumf>, %15, %cst_15 [0] : vector<8x128xf32> to vector<128xf32>
    %19 = vector.shape_cast %18 : vector<128xf32> to vector<1x128xf32>
    %20 = arith.maximumf %17, %19 : vector<1x128xf32>
    %c0_16 = arith.constant 0 : index
    %c0_17 = arith.constant 0 : index
    %c0_18 = arith.constant 0 : index
    %21 = vector.load %arg8[%c0_16, %c0_17, %c0_18] : memref<1x1x128xf32, #tpu.memory_space<vmem>>, vector<1x1x128xf32>
    %22 = vector.shape_cast %21 : vector<1x1x128xf32> to vector<1x128xf32>
    %23 = vector.shape_cast %20 : vector<1x128xf32> to vector<1x1x128xf32>
    tpu.vector_store %arg8[%c0_16, %c0_17, %c0_18], %23 {strides = array<i32>} : memref<1x1x128xf32, #tpu.memory_space<vmem>>, vector<1x1x128xf32>,
    %c0_i32_19 = arith.constant 0 : i32
    %24 = arith.cmpi eq, %arg1, %c0_i32_19 : i32
    %25 = arith.extui %24 : i1 to i32
    %c0_i32_20 = arith.constant 0 : i32
    %26 = arith.cmpi ne, %25, %c0_i32_20 : i32
    scf.if %26 {
      %c0_21 = arith.constant 0 : index
      %c0_22 = arith.constant 0 : index
      %c0_23 = arith.constant 0 : index
      %27 = vector.load %arg8[%c0_21, %c0_22, %c0_23] : memref<1x1x128xf32, #tpu.memory_space<vmem>>, vector<1x1x128xf32>
      %28 = vector.shape_cast %27 : vector<1x1x128xf32> to vector<1x128xf32>
      %c0_24 = arith.constant 0 : index
      %c0_25 = arith.constant 0 : index
      %29 = vector.load %arg7[%c0_24, %c0_25] : memref<1x128xf32, #tpu.memory_space<vmem>>, vector<1x128xf32>
      %30 = arith.addf %28, %29 : vector<1x128xf32>
      %c0_26 = arith.constant 0 : index
      %c0_27 = arith.constant 0 : index
      %c0_28 = arith.constant 0 : index
      %31 = vector.load %arg4[%c0_26, %c0_27, %c0_28] : memref<1x1x128xf32, #tpu.memory_space<vmem>>, vector<1x1x128xf32>
      %32 = vector.shape_cast %31 : vector<1x1x128xf32> to vector<1x128xf32>
      %cst_29 = arith.constant 5.000000e-01 : f32
      %33 = vector.broadcast %cst_29 : f32 to vector<1x128xf32>
      %34 = arith.cmpf ogt, %32, %33 : vector<1x128xf32>
      %cst_30 = arith.constant 0xFF800000 : f32
      %35 = vector.broadcast %cst_30 : f32 to vector<1x128xf32>
      %36 = arith.select %34, %35, %30 : vector<1x128xi1>, vector<1x128xf32>
      %c0_31 = arith.constant 0 : index
      %c0_32 = arith.constant 0 : index
      %c0_33 = arith.constant 0 : index
      %37 = vector.load %arg8[%c0_31, %c0_32, %c0_33] : memref<1x1x128xf32, #tpu.memory_space<vmem>>, vector<1x1x128xf32>
      %38 = vector.shape_cast %37 : vector<1x1x128xf32> to vector<1x128xf32>
      %39 = vector.shape_cast %36 : vector<1x128xf32> to vector<1x1x128xf32>
      tpu.vector_store %arg8[%c0_31, %c0_32, %c0_33], %39 {strides = array<i32>} : memref<1x1x128xf32, #tpu.memory_space<vmem>>, vector<1x1x128xf32>,
    } else {
    }
    return
  }
  func.func @transform_0(%arg0: i32, %arg1: i32) -> (i32, i32, i32) {
    %c0_i32 = arith.constant 0 : i32
    %c0_i32_0 = arith.constant 0 : i32
    return %arg0, %arg1, %c0_i32 : i32, i32, i32
  }
  func.func @transform_1(%arg0: i32, %arg1: i32) -> (i32, i32, i32) {
    %c0_i32 = arith.constant 0 : i32
    %c0_i32_0 = arith.constant 0 : i32
    %c0_i32_1 = arith.constant 0 : i32
    return %arg0, %c0_i32, %c0_i32_0 : i32, i32, i32
  }
  func.func @transform_2(%arg0: i32, %arg1: i32) -> (i32, i32, i32) {
    %c0_i32 = arith.constant 0 : i32
    %c0_i32_0 = arith.constant 0 : i32
    %c0_i32_1 = arith.constant 0 : i32
    return %arg0, %c0_i32, %c0_i32_0 : i32, i32, i32
  }
  func.func @transform_3(%arg0: i32, %arg1: i32) -> (i32, i32) {
    %c0_i32 = arith.constant 0 : i32
    %c0_i32_0 = arith.constant 0 : i32
    %c0_i32_1 = arith.constant 0 : i32
    return %c0_i32, %c0_i32_0 : i32, i32
  }
  func.func @transform_4(%arg0: i32, %arg1: i32) -> (i32, i32) {
    %c0_i32 = arith.constant 0 : i32
    %c0_i32_0 = arith.constant 0 : i32
    %c0_i32_1 = arith.constant 0 : i32
    return %c0_i32, %c0_i32_0 : i32, i32
  }
  func.func @transform_5(%arg0: i32, %arg1: i32) -> (i32, i32) {
    %c0_i32 = arith.constant 0 : i32
    %c0_i32_0 = arith.constant 0 : i32
    %c0_i32_1 = arith.constant 0 : i32
    return %c0_i32, %c0_i32_0 : i32, i32
  }
  func.func @transform_6(%arg0: i32, %arg1: i32) -> (i32, i32, i32) {
    %c0_i32 = arith.constant 0 : i32
    %c0_i32_0 = arith.constant 0 : i32
    %c0_i32_1 = arith.constant 0 : i32
    return %arg0, %c0_i32, %c0_i32_0 : i32, i32, i32
  }
}

</mosaic_0001>

<llo_original>
// kernel: tpu_custom_call.1
$region0: #{tpu_custom_call.1}
  #allocation0 [shape = 'u32[]', space=smem, size = 0x4, offset = 0x4, fixed_abs, tag = 'smem constant byte address 0x4 - core index']
  #allocation1 [shape = 'u32[72,128]{1,0:T(1,128)}', space=vmem, size = 0x9000, scoped, tag = 'internal scratch']
  %s0 = inlined_call_operand.hbm [shape: bf16[2,8,32], index: 0, kind: input, shape index: {}]
  %s1 = inlined_call_operand.hbm [shape: f32[2,1,128], index: 1, kind: input, shape index: {}]
  %s2 = inlined_call_operand.hbm [shape: f32[2,1,128], index: 2, kind: input, shape index: {}]
  %s3 = inlined_call_operand.hbm [shape: bf16[32,128], index: 3, kind: input, shape index: {}]
  %s4 = inlined_call_operand.hbm [shape: bf16[128,128], index: 4, kind: input, shape index: {}]
  %s5 = inlined_call_operand.vmem [shape: f32[1,128], index: 5, kind: input, shape index: {}]
  %s6 = inlined_call_operand.hbm [shape: f32[2,1,128], index: 6, kind: output, shape index: {}]
  %s7 = sld [smem:[#allocation0]]
  $region85: #{tpu_custom_call.1} parent=0
    _
  %s9 = ssub.s32 1, %s7
  %s10 = scalar_select 0, %s9, %s7
  $region1: #{tpu_custom_call.1} parent=0
    #allocation2 [shape = 'u8[4096]{0}', space=vmem, size = 0x1000, scoped, tag = 'input window, operand 0']
    #allocation3 [shape = 's32[2]{0}', space=sflag, size = 0x8, scoped, tag = 'scoped memory for tpu_custom_call.1']
    #allocation4 [shape = 's32[2]{0}', space=sflag, size = 0x8, scoped, tag = 'scoped memory for tpu_custom_call.1']
    #allocation5 [shape = 'u8[1024]{0}', space=vmem, size = 0x400, scoped, tag = 'input window, operand 1']
    #allocation6 [shape = 's32[2]{0}', space=sflag, size = 0x8, scoped, tag = 'scoped memory for tpu_custom_call.1']
    #allocation7 [shape = 'u8[1024]{0}', space=vmem, size = 0x400, scoped, tag = 'input window, operand 2']
    #allocation8 [shape = 'u8[8192]{0}', space=vmem, size = 0x2000, scoped, tag = 'input window, operand 3, single buffered']
    #allocation9 [shape = 's32[1]{0}', space=sflag, size = 0x4, scoped, tag = 'scoped memory for tpu_custom_call.1']
    #allocation10 [shape = 'u8[32768]{0}', space=vmem, size = 0x8000, scoped, tag = 'input window, operand 4, single buffered']
    #allocation11 [shape = 'u8[1024]{0}', space=vmem, size = 0x400, scoped, tag = 'output window, operand 0']
    %11 = vsyncpa [#allocation3], 0
    %s12 = scalar_lea.sflag [#allocation3], 1
    %13 = vsyncpa %s12, 0
    %14 = vsyncpa [#allocation6], 0
    %s15 = scalar_lea.sflag [#allocation6], 1
    %16 = vsyncpa %s15, 0
    %17 = vsyncpa [#allocation9], 0
    %18 = vsyncpa [#allocation4], 0
    %s19 = scalar_lea.sflag [#allocation4], 1
    %20 = vsyncpa %s19, 0
    loop: start=0, step=1, limit=4
    $region2: #{tpu_custom_call.1} parent=1 // loop_pre_header
      _
    $region3: #{tpu_custom_call.1} parent=1 // loop_header
      %s22 = sphi 0, %s26
      %p23 = scmp.ge.s32.totalorder %s22, 4
      %s29 = sphi 0, %s41
      %s30 = sphi 0, %s37
      %s31 = sphi 0, %s29
      %s32 = sphi 0, %s30
      %s33 = sphi 0, %s31
      %s34 = sphi 0, %s32
      %s46 = sphi 0, %s48
      %s49 = sphi 0, %s46
      %s50 = sphi 0, %s49
      %s66 = sphi 0, %s50
      %s72 = sphi 0, %s74
      %s75 = sphi 0, %s72
      %s76 = sphi 0, %s75
      %s92 = sphi 0, %s76
      %s98 = sphi 0, %s100
      %s101 = sphi 0, %s98
      %s102 = sphi 0, %s101
      %s118 = sphi 0, %s102
      %s122 = sphi 0, %s122
      %s124 = sphi 0, %s122
      %s125 = sphi 0, %s124
      %s139 = sphi 0, %s125
      %s143 = sphi 0, %s143
      %s145 = sphi 0, %s143
      %s146 = sphi 0, %s145
      %s160 = sphi 0, %s146
      %s164 = sphi 0, %s164
      %s166 = sphi 0, %s164
      %s167 = sphi 0, %s166
      %s181 = sphi 0, %s167
      %s187 = sphi 0, %s189
      %s190 = sphi 0, %s187
      %s191 = sphi 0, %s190
      %s207 = sphi 0, %s191
    $region4: #{tpu_custom_call.1} parent=1 // loop_header_branch
      %25 = sbr.rel (%p23) target = $region8
    $region5: #{tpu_custom_call.1} parent=1 // loop_body
      %s27 = ssub.s32 %s22, 1
      %s28 = ssub.s32 %s22, 2
      %s35 = sadd.s32 1, %s30
      %p36 = scmp.ge.s32.totalorder %s35, 1
      %s37 = scalar_select %p36, 0, %s35
      %s38 = sadd.s32 1, %s29
      %s39 = scalar_select %p36, %s38, %s29
      %p40 = scmp.ge.s32.totalorder %s39, 2
      %s41 = scalar_select %p40, 0, %s39
      %s42 = ssub.s32 %s29, %s41
      %s43 = ssub.s32 %s30, %s37
      %s44 = sor.u32 %s42, %s43
      %p45 = scmp.eq.s32.totalorder %s44, 0
      %s47 = sadd.s32 %s46, 1
      %s48 = scalar_select %p45, %s46, %s47
      %p51 = pneg %p45
      %p52 = scmp.eq.s32.totalorder %s22, 1
      %p53 = por %p51, %p52
      %p54 = scmp.ne.s32.totalorder %s46, %s49
      %p55 = scmp.eq.s32.totalorder %s22, 0
      %p56 = por %p54, %p55
      %p57 = scmp.ne.s32.totalorder %s46, %s49
      %p58 = scmp.eq.s32.totalorder %s27, 1
      %p59 = por %p57, %p58
      %p60 = scmp.ne.s32.totalorder %s49, %s50
      %p61 = scmp.eq.s32.totalorder %s27, 0
      %p62 = por %p60, %p61
      %p63 = scmp.ne.s32.totalorder %s49, %s50
      %p64 = scmp.eq.s32.totalorder %s28, 1
      %p65 = por %p63, %p64
      %p67 = scmp.ne.s32.totalorder %s50, %s66
      %p68 = scmp.eq.s32.totalorder %s28, 0
      %p69 = por %p67, %p68
      %s70 = ssub.s32 %s29, %s41
      %p71 = scmp.eq.s32.totalorder %s70, 0
      %s73 = sadd.s32 %s72, 1
      %s74 = scalar_select %p71, %s72, %s73
      %p77 = pneg %p71
      %p78 = scmp.eq.s32.totalorder %s22, 1
      %p79 = por %p77, %p78
      %p80 = scmp.ne.s32.totalorder %s72, %s75
      %p81 = scmp.eq.s32.totalorder %s22, 0
      %p82 = por %p80, %p81
      %p83 = scmp.ne.s32.totalorder %s72, %s75
      %p84 = scmp.eq.s32.totalorder %s27, 1
      %p85 = por %p83, %p84
      %p86 = scmp.ne.s32.totalorder %s75, %s76
      %p87 = scmp.eq.s32.totalorder %s27, 0
      %p88 = por %p86, %p87
      %p89 = scmp.ne.s32.totalorder %s75, %s76
      %p90 = scmp.eq.s32.totalorder %s28, 1
      %p91 = por %p89, %p90
      %p93 = scmp.ne.s32.totalorder %s76, %s92
      %p94 = scmp.eq.s32.totalorder %s28, 0
      %p95 = por %p93, %p94
      %s96 = ssub.s32 %s29, %s41
      %p97 = scmp.eq.s32.totalorder %s96, 0
      %s99 = sadd.s32 %s98, 1
      %s100 = scalar_select %p97, %s98, %s99
      %p103 = pneg %p97
      %p104 = scmp.eq.s32.totalorder %s22, 1
      %p105 = por %p103, %p104
      %p106 = scmp.ne.s32.totalorder %s98, %s101
      %p107 = scmp.eq.s32.totalorder %s22, 0
      %p108 = por %p106, %p107
      %p109 = scmp.ne.s32.totalorder %s98, %s101
      %p110 = scmp.eq.s32.totalorder %s27, 1
      %p111 = por %p109, %p110
      %p112 = scmp.ne.s32.totalorder %s101, %s102
      %p113 = scmp.eq.s32.totalorder %s27, 0
      %p114 = por %p112, %p113
      %p115 = scmp.ne.s32.totalorder %s101, %s102
      %p116 = scmp.eq.s32.totalorder %s28, 1
      %p117 = por %p115, %p116
      %p119 = scmp.ne.s32.totalorder %s102, %s118
      %p120 = scmp.eq.s32.totalorder %s28, 0
      %p121 = por %p119, %p120
      %s123 = sadd.s32 %s122, 1
      %p126 = scmp.eq.s32.totalorder %s22, 1
      %p127 = scmp.ne.s32.totalorder %s122, %s124
      %p128 = scmp.eq.s32.totalorder %s22, 0
      %p129 = por %p127, %p128
      %p130 = scmp.ne.s32.totalorder %s122, %s124
      %p131 = scmp.eq.s32.totalorder %s27, 1
      %p132 = por %p130, %p131
      %p133 = scmp.ne.s32.totalorder %s124, %s125
      %p134 = scmp.eq.s32.totalorder %s27, 0
      %p135 = por %p133, %p134
      %p136 = scmp.ne.s32.totalorder %s124, %s125
      %p137 = scmp.eq.s32.totalorder %s28, 1
      %p138 = por %p136, %p137
      %p140 = scmp.ne.s32.totalorder %s125, %s139
      %p141 = scmp.eq.s32.totalorder %s28, 0
      %p142 = por %p140, %p141
      %s144 = sadd.s32 %s143, 1
      %p147 = scmp.eq.s32.totalorder %s22, 1
      %p148 = scmp.ne.s32.totalorder %s143, %s145
      %p149 = scmp.eq.s32.totalorder %s22, 0
      %p150 = por %p148, %p149
      %p151 = scmp.ne.s32.totalorder %s143, %s145
      %p152 = scmp.eq.s32.totalorder %s27, 1
      %p153 = por %p151, %p152
      %p154 = scmp.ne.s32.totalorder %s145, %s146
      %p155 = scmp.eq.s32.totalorder %s27, 0
      %p156 = por %p154, %p155
      %p157 = scmp.ne.s32.totalorder %s145, %s146
      %p158 = scmp.eq.s32.totalorder %s28, 1
      %p159 = por %p157, %p158
      %p161 = scmp.ne.s32.totalorder %s146, %s160
      %p162 = scmp.eq.s32.totalorder %s28, 0
      %p163 = por %p161, %p162
      %s165 = sadd.s32 %s164, 1
      %p168 = scmp.eq.s32.totalorder %s22, 1
      %p169 = scmp.ne.s32.totalorder %s164, %s166
      %p170 = scmp.eq.s32.totalorder %s22, 0
      %p171 = por %p169, %p170
      %p172 = scmp.ne.s32.totalorder %s164, %s166
      %p173 = scmp.eq.s32.totalorder %s27, 1
      %p174 = por %p172, %p173
      %p175 = scmp.ne.s32.totalorder %s166, %s167
      %p176 = scmp.eq.s32.totalorder %s27, 0
      %p177 = por %p175, %p176
      %p178 = scmp.ne.s32.totalorder %s166, %s167
      %p179 = scmp.eq.s32.totalorder %s28, 1
      %p180 = por %p178, %p179
      %p182 = scmp.ne.s32.totalorder %s167, %s181
      %p183 = scmp.eq.s32.totalorder %s28, 0
      %p184 = por %p182, %p183
      %s185 = ssub.s32 %s29, %s41
      %p186 = scmp.eq.s32.totalorder %s185, 0
      %s188 = sadd.s32 %s187, 1
      %s189 = scalar_select %p186, %s187, %s188
      %p192 = pneg %p186
      %p193 = scmp.eq.s32.totalorder %s22, 1
      %p194 = por %p192, %p193
      %p195 = scmp.ne.s32.totalorder %s187, %s190
      %p196 = scmp.eq.s32.totalorder %s22, 0
      %p197 = por %p195, %p196
      %p198 = scmp.ne.s32.totalorder %s187, %s190
      %p199 = scmp.eq.s32.totalorder %s27, 1
      %p200 = por %p198, %p199
      %p201 = scmp.ne.s32.totalorder %s190, %s191
      %p202 = scmp.eq.s32.totalorder %s27, 0
      %p203 = por %p201, %p202
      %p204 = scmp.ne.s32.totalorder %s190, %s191
      %p205 = scmp.eq.s32.totalorder %s28, 1
      %p206 = por %p204, %p205
      %p208 = scmp.ne.s32.totalorder %s191, %s207
      %p209 = scmp.eq.s32.totalorder %s28, 0
      %p210 = por %p208, %p209
      %p211 = scmp.le.s32.totalorder 1, %s22
      %p212 = scmp.lt.s32.totalorder %s22, 3
      %p213 = pnand %p211, %p212
      %p214 = pneg %p213
      // Predicated region
      $region9: #{tpu_custom_call.1} parent=5 // pred_check
        _
      $region10: #{tpu_custom_call.1} parent=5 // pred_check_branch
        %216 = sbr.rel (%p213) target = $region12
      $region11: #{tpu_custom_call.1} parent=5 // pred_region
        %s217 = ssub.s32 %s22, 1
        // Predicated region
        $region13: #{tpu_custom_call.1} parent=11 // pred_check
          %p218 = pneg %p135
        $region14: #{tpu_custom_call.1} parent=11 // pred_check_branch
          %220 = sbr.rel (%p218) target = $region16
        $region15: #{tpu_custom_call.1} parent=11 // pred_region
          %222 = vsyncadd [#allocation9], 0
          %s223 = sshll.u32 %s3, 4
          %s224 = int_to_ptr.hbm [resolvable:$true] %s223
          %s225 = sshll.u32 [#allocation8], 4
          %s226 = int_to_ptr.vmem [resolvable:$true] %s225
          %231 = dma.hbm_to_vmem [thread:$0]  %s224, 256, %s226, [#allocation9], 64, 64, 4
        $region16: #{tpu_custom_call.1} parent=11 // pred_fallthru
          _
        // Predicated region
        $region17: #{tpu_custom_call.1} parent=11 // pred_check
          %p232 = pneg %p156
        $region18: #{tpu_custom_call.1} parent=11 // pred_check_branch
          %234 = sbr.rel (%p232) target = $region20
        $region19: #{tpu_custom_call.1} parent=11 // pred_region
          %236 = vsyncadd [#allocation9], 0
          %s237 = sshll.u32 %s4, 4
          %s238 = int_to_ptr.hbm [resolvable:$true] %s237
          %s239 = sshll.u32 [#allocation10], 4
          %s240 = int_to_ptr.vmem [resolvable:$true] %s239
          %245 = dma.hbm_to_vmem [thread:$0]  %s238, 1024, %s240, [#allocation9], 64, 64, 4
        $region20: #{tpu_custom_call.1} parent=11 // pred_fallthru
          _
        // Predicated region
        $region21: #{tpu_custom_call.1} parent=11 // pred_check
          %p246 = pneg %p177
        $region22: #{tpu_custom_call.1} parent=11 // pred_check_branch
          %248 = sbr.rel (%p246) target = $region24
        $region23: #{tpu_custom_call.1} parent=11 // pred_region
          _
        $region24: #{tpu_custom_call.1} parent=11 // pred_fallthru
          _
      $region12: #{tpu_custom_call.1} parent=5 // pred_fallthru
        _
      %p249 = scmp.lt.s32.totalorder %s22, 2
      // Predicated region
      $region25: #{tpu_custom_call.1} parent=5 // pred_check
        %p250 = pneg %p249
      $region26: #{tpu_custom_call.1} parent=5 // pred_check_branch
        %252 = sbr.rel (%p250) target = $region28
      $region27: #{tpu_custom_call.1} parent=5 // pred_region
        // Predicated region
        $region29: #{tpu_custom_call.1} parent=27 // pred_check
          %p253 = pneg %p56
        $region30: #{tpu_custom_call.1} parent=27 // pred_check_branch
          %255 = sbr.rel (%p253) target = $region32
        $region31: #{tpu_custom_call.1} parent=27 // pred_region
          %s256 = sand.u32 %s46, 1
          %s257 = scalar_lea.sflag [#allocation3], %s256
          %s258 = sand.u32 %s46, 1
          %s259 = smul.addr %s258, 4
          %s260 = scalar_lea.vmem [#allocation2], %s259
          %262 = vsyncadd %s257, 0
          %s263 = sadd.s32 %s30, %s29
          %s264 = smul.addr %s263, 4
          %s265 = scalar_lea.hbm %s0, %s264
          %s267 = sshll.u32 %s265, 4
          %s268 = int_to_ptr.hbm [resolvable:$true] %s267
          %s269 = sshll.u32 %s260, 4
          %s270 = int_to_ptr.vmem [resolvable:$true] %s269
          %272 = dma.hbm_to_vmem [thread:$0]  %s268, 64, %s270, %s257
        $region32: #{tpu_custom_call.1} parent=27 // pred_fallthru
          _
        // Predicated region
        $region33: #{tpu_custom_call.1} parent=27 // pred_check
          %p273 = pneg %p82
        $region34: #{tpu_custom_call.1} parent=27 // pred_check_branch
          %275 = sbr.rel (%p273) target = $region36
        $region35: #{tpu_custom_call.1} parent=27 // pred_region
          %s276 = sand.u32 %s22, 1
          %s277 = scalar_lea.sflag [#allocation6], %s276
          %s278 = sand.u32 %s72, 1
          %s279 = scalar_lea.vmem [#allocation5], %s278
          %281 = vsyncadd %s277, 0
          %s282 = scalar_lea.hbm %s1, %s29
          %s284 = sshll.u32 %s282, 4
          %s285 = int_to_ptr.hbm [resolvable:$true] %s284
          %s286 = sshll.u32 %s279, 4
          %s287 = int_to_ptr.vmem [resolvable:$true] %s286
          %289 = dma.hbm_to_vmem [thread:$0]  %s285, 16, %s287, %s277
        $region36: #{tpu_custom_call.1} parent=27 // pred_fallthru
          _
        // Predicated region
        $region37: #{tpu_custom_call.1} parent=27 // pred_check
          %p290 = pneg %p108
        $region38: #{tpu_custom_call.1} parent=27 // pred_check_branch
          %292 = sbr.rel (%p290) target = $region40
        $region39: #{tpu_custom_call.1} parent=27 // pred_region
          %s293 = sand.u32 %s22, 1
          %s294 = scalar_lea.sflag [#allocation6], %s293
          %s295 = sand.u32 %s98, 1
          %s296 = scalar_lea.vmem [#allocation7], %s295
          %298 = vsyncadd %s294, 0
          %s299 = scalar_lea.hbm %s2, %s29
          %s301 = sshll.u32 %s299, 4
          %s302 = int_to_ptr.hbm [resolvable:$true] %s301
          %s303 = sshll.u32 %s296, 4
          %s304 = int_to_ptr.vmem [resolvable:$true] %s303
          %306 = dma.hbm_to_vmem [thread:$0]  %s302, 16, %s304, %s294
        $region40: #{tpu_custom_call.1} parent=27 // pred_fallthru
          _
      $region28: #{tpu_custom_call.1} parent=5 // pred_fallthru
        _
      %p307 = scmp.le.s32.totalorder 1, %s22
      %p308 = scmp.lt.s32.totalorder %s22, 3
      %p309 = pnand %p307, %p308
      %p310 = pneg %p309
      // Predicated region
      $region41: #{tpu_custom_call.1} parent=5 // pred_check
        _
      $region42: #{tpu_custom_call.1} parent=5 // pred_check_branch
        %312 = sbr.rel (%p309) target = $region44
      $region43: #{tpu_custom_call.1} parent=5 // pred_region
        %s313 = ssub.s32 %s22, 1
        %s314 = sand.u32 %s49, 1
        %s315 = scalar_lea.sflag [#allocation3], %s314
        %s316 = sand.u32 %s49, 1
        %s317 = smul.addr %s316, 4
        %s318 = scalar_lea.vmem [#allocation2], %s317
        // Predicated region
        $region45: #{tpu_custom_call.1} parent=43 // pred_check
          %p319 = pneg %p62
        $region46: #{tpu_custom_call.1} parent=43 // pred_check_branch
          %321 = sbr.rel (%p319) target = $region48
        $region47: #{tpu_custom_call.1} parent=43 // pred_region
          %323 = dma.done %s315, 64
        $region48: #{tpu_custom_call.1} parent=43 // pred_fallthru
          _
        %s324 = sand.u32 %s27, 1
        %s325 = scalar_lea.sflag [#allocation6], %s324
        %s326 = sand.u32 %s75, 1
        %s327 = scalar_lea.vmem [#allocation5], %s326
        // Predicated region
        $region49: #{tpu_custom_call.1} parent=43 // pred_check
          %p328 = pneg %p88
        $region50: #{tpu_custom_call.1} parent=43 // pred_check_branch
          %330 = sbr.rel (%p328) target = $region52
        $region51: #{tpu_custom_call.1} parent=43 // pred_region
          %332 = dma.done %s325, 16
        $region52: #{tpu_custom_call.1} parent=43 // pred_fallthru
          _
        %s333 = sand.u32 %s27, 1
        %s334 = scalar_lea.sflag [#allocation6], %s333
        %s335 = sand.u32 %s101, 1
        %s336 = scalar_lea.vmem [#allocation7], %s335
        // Predicated region
        $region53: #{tpu_custom_call.1} parent=43 // pred_check
          %p337 = pneg %p114
        $region54: #{tpu_custom_call.1} parent=43 // pred_check_branch
          %339 = sbr.rel (%p337) target = $region56
        $region55: #{tpu_custom_call.1} parent=43 // pred_region
          %341 = dma.done %s334, 16
        $region56: #{tpu_custom_call.1} parent=43 // pred_fallthru
          _
        // Predicated region
        $region57: #{tpu_custom_call.1} parent=43 // pred_check
          %p342 = pneg %p135
        $region58: #{tpu_custom_call.1} parent=43 // pred_check_branch
          %344 = sbr.rel (%p342) target = $region60
        $region59: #{tpu_custom_call.1} parent=43 // pred_region
          %346 = dma.done [#allocation9], 256
        $region60: #{tpu_custom_call.1} parent=43 // pred_fallthru
          _
        // Predicated region
        $region61: #{tpu_custom_call.1} parent=43 // pred_check
          %p347 = pneg %p156
        $region62: #{tpu_custom_call.1} parent=43 // pred_check_branch
          %349 = sbr.rel (%p347) target = $region64
        $region63: #{tpu_custom_call.1} parent=43 // pred_region
          %351 = dma.done [#allocation9], 1024
        $region64: #{tpu_custom_call.1} parent=43 // pred_fallthru
          _
        %s352 = sand.u32 %s49, 1
        %s353 = scalar_lea.sflag [#allocation3], %s352
        %s354 = sand.u32 %s49, 1
        %s355 = smul.addr %s354, 4
        %s356 = scalar_lea.vmem [#allocation2], %s355
        %p357 = pneg %p62
        %p358 = pneg %p59
        %s359 = sand.u32 %s27, 1
        %s360 = scalar_lea.sflag [#allocation6], %s359
        %s361 = sand.u32 %s75, 1
        %s362 = scalar_lea.vmem [#allocation5], %s361
        %p363 = pneg %p88
        %p364 = pneg %p85
        %s365 = sand.u32 %s27, 1
        %s366 = scalar_lea.sflag [#allocation6], %s365
        %s367 = sand.u32 %s101, 1
        %s368 = scalar_lea.vmem [#allocation7], %s367
        %p369 = pneg %p114
        %p370 = pneg %p111
        %p371 = pneg %p135
        %p372 = pneg %p132
        %p373 = pneg %p156
        %p374 = pneg %p153
        %p375 = pneg %p177
        %p376 = pneg %p174
        %p377 = pneg %p203
        %p378 = pneg %p200
        %s379 = sand.u32 %s190, 1
        %s380 = scalar_lea.sflag [#allocation4], %s379
        %s381 = sand.u32 %s190, 1
        %s382 = scalar_lea.vmem [#allocation11], %s381
        %p384 = scmp.eq.s32.totalorder %s32, 0
        // Predicated region
        $region65: #{tpu_custom_call.1} parent=43 // pred_check
          %p385 = pneg %p384
        $region66: #{tpu_custom_call.1} parent=43 // pred_check_branch
          %387 = sbr.rel (%p385) target = $region68
        $region67: #{tpu_custom_call.1} parent=43 // pred_region
          %388 = vst [vmem:[%s382] sm:$0x1] -inf
        $region68: #{tpu_custom_call.1} parent=43 // pred_fallthru
          _
        %v389 = vld [vmem:[%s318] sm:$0xf]
        %v390 = vld [vmem:[#allocation8] sm:$0xf]
        %v391 = vld [vmem:[#allocation8 + $0x4] sm:$0xf]
        %v392 = vld [vmem:[#allocation8 + $0x8] sm:$0xf]
        %v393 = vld [vmem:[#allocation8 + $0xc] sm:$0xf]
        %v394 = vld [vmem:[%s327] sm:$0x1]
        %v396 = vperm.slane %v394, 0
        %v402 = vunpack.c.l.b16 %v390
        %v403 = vunpack.c.l.b16 %v391
        %v404 = vunpack.c.l.b16 %v392
        %v405 = vunpack.c.l.b16 %v393
        %v406 = vpack.c.b16 %v403, %v402
        %v407 = vpack.c.b16 %v405, %v404
        %vm410 = vcmask 261120
        %v412 = vsel %vm410, %v389, 0
        %414 = vmatpush.bf16.msra.mxu0 0
        %415 = vmatpush.bf16.msra.mxu0 0
        %416 = vmatpush.bf16.msra.mxu0 0
        %417 = vmatpush.bf16.msra.mxu0 0
        %418 = vmatpush.bf16.msra.mxu0 0
        %419 = vmatpush.bf16.msra.mxu0 0
        %420 = vmatpush.bf16.msra.mxu0 %v407
        %421 = vmatpush.bf16.msra.mxu0 %v406
        %422 = vmatmul.bf16.gmra.mxu0 %v412
        %v423 = vpop.f32.mrf.mxu0
        %v424 = vadd.f32 %v396, %v423
        %v425 = vpop.f32.mrf.mxu0
        %426 = vdwg.mxu0
        %v427 = vmax.f32 %v424, 0.0
        %v428 = vpack.c.bf16 %v427, %v427
        %v429 = vld [vmem:[#allocation10] sm:$0xf]
        %v430 = vld [vmem:[#allocation10 + $0x4] sm:$0xf]
        %v431 = vld [vmem:[#allocation10 + $0x8] sm:$0xf]
        %v432 = vld [vmem:[#allocation10 + $0xc] sm:$0xf]
        %v433 = vld [vmem:[#allocation10 + $0x10] sm:$0xf]
        %v434 = vld [vmem:[#allocation10 + $0x14] sm:$0xf]
        %v435 = vld [vmem:[#allocation10 + $0x18] sm:$0xf]
        %v436 = vld [vmem:[#allocation10 + $0x1c] sm:$0xf]
        %v437 = vld [vmem:[#allocation10 + $0x20] sm:$0xf]
        %v438 = vld [vmem:[#allocation10 + $0x24] sm:$0xf]
        %v439 = vld [vmem:[#allocation10 + $0x28] sm:$0xf]
        %v440 = vld [vmem:[#allocation10 + $0x2c] sm:$0xf]
        %v441 = vld [vmem:[#allocation10 + $0x30] sm:$0xf]
        %v442 = vld [vmem:[#allocation10 + $0x34] sm:$0xf]
        %v443 = vld [vmem:[#allocation10 + $0x38] sm:$0xf]
        %v444 = vld [vmem:[#allocation10 + $0x3c] sm:$0xf]
        %v461 = vunpack.c.l.b16 %v429
        %v462 = vunpack.c.l.b16 %v430
        %v463 = vunpack.c.l.b16 %v431
        %v464 = vunpack.c.l.b16 %v432
        %v465 = vunpack.c.l.b16 %v433
        %v466 = vunpack.c.l.b16 %v434
        %v467 = vunpack.c.l.b16 %v435
        %v468 = vunpack.c.l.b16 %v436
        %v469 = vunpack.c.l.b16 %v437
        %v470 = vunpack.c.l.b16 %v438
        %v471 = vunpack.c.l.b16 %v439
        %v472 = vunpack.c.l.b16 %v440
        %v473 = vunpack.c.l.b16 %v441
        %v474 = vunpack.c.l.b16 %v442
        %v475 = vunpack.c.l.b16 %v443
        %v476 = vunpack.c.l.b16 %v444
        %v477 = vpack.c.b16 %v462, %v461
        %v478 = vpack.c.b16 %v464, %v463
        %v479 = vpack.c.b16 %v466, %v465
        %v480 = vpack.c.b16 %v468, %v467
        %v481 = vpack.c.b16 %v470, %v469
        %v482 = vpack.c.b16 %v472, %v471
        %v483 = vpack.c.b16 %v474, %v473
        %v484 = vpack.c.b16 %v476, %v475
        %493 = vmatpush.bf16.msra.mxu0 %v484
        %494 = vmatpush.bf16.msra.mxu0 %v483
        %495 = vmatpush.bf16.msra.mxu0 %v482
        %496 = vmatpush.bf16.msra.mxu0 %v481
        %497 = vmatpush.bf16.msra.mxu0 %v480
        %498 = vmatpush.bf16.msra.mxu0 %v479
        %499 = vmatpush.bf16.msra.mxu0 %v478
        %500 = vmatpush.bf16.msra.mxu0 %v477
        %501 = vmatmul.bf16.gmra.mxu0 %v428
        %v502 = vpop.f32.mrf.mxu0
        %v503 = vadd.f32 0.0, %v502
        %v504 = vpop.f32.mrf.mxu0
        %505 = vdwg.mxu0
        %v506 = vld [vmem:[%s382] sm:$0x1]
        %v507 = vrot.slane %v503, 4
        %v508 = vmax.f32 %v503, %v507
        %v509 = vrot.slane %v508, 2
        %v510 = vmax.f32 %v508, %v509
        %v511 = vrot.slane %v510, 1
        %v512 = vmax.f32 %v510, %v511
        %v513 = vmax.f32 %v506, %v512
        %514 = vst [vmem:[%s382] sm:$0x1] %v513
        // Predicated region
        $region69: #{tpu_custom_call.1} parent=43 // pred_check
          %p515 = pneg %p384
        $region70: #{tpu_custom_call.1} parent=43 // pred_check_branch
          %517 = sbr.rel (%p515) target = $region72
        $region71: #{tpu_custom_call.1} parent=43 // pred_region
          %v518 = vld [vmem:[%s382] sm:$0x1]
          %v519 = vld [vmem:[%s5] sm:$0x1]
          %v520 = vadd.f32 %v518, %v519
          %v521 = vld [vmem:[%s336] sm:$0x1]
          %vm522 = vcmp.gt.f32.partialorder %v521, 0.5
          %v523 = vsel %vm522, -inf, %v520
          %524 = vst [vmem:[%s382] sm:$0x1] %v523
        $region72: #{tpu_custom_call.1} parent=43 // pred_fallthru
          _
        %s525 = sand.u32 %s190, 1
        %s526 = scalar_lea.sflag [#allocation4], %s525
        %s527 = sand.u32 %s190, 1
        %s528 = scalar_lea.vmem [#allocation11], %s527
        // Predicated region
        $region73: #{tpu_custom_call.1} parent=43 // pred_check
          %p529 = pneg %p200
        $region74: #{tpu_custom_call.1} parent=43 // pred_check_branch
          %531 = sbr.rel (%p529) target = $region76
        $region75: #{tpu_custom_call.1} parent=43 // pred_region
          %533 = vsyncadd %s526, 0
          %s534 = scalar_lea.hbm %s6, %s31
          %s536 = sshll.u32 %s528, 4
          %s537 = int_to_ptr.vmem [resolvable:$true] %s536
          %s538 = sshll.u32 %s534, 4
          %s539 = int_to_ptr.hbm [resolvable:$true] %s538
          %541 = dma.vmem_to_hbm [thread:$0]  %s537, 16, %s539, %s526
        $region76: #{tpu_custom_call.1} parent=43 // pred_fallthru
          _
      $region44: #{tpu_custom_call.1} parent=5 // pred_fallthru
        _
      %p542 = scmp.le.s32.totalorder 2, %s22
      // Predicated region
      $region77: #{tpu_custom_call.1} parent=5 // pred_check
        %p543 = pneg %p542
      $region78: #{tpu_custom_call.1} parent=5 // pred_check_branch
        %545 = sbr.rel (%p543) target = $region80
      $region79: #{tpu_custom_call.1} parent=5 // pred_region
        %s546 = ssub.s32 %s22, 2
        // Predicated region
        $region81: #{tpu_custom_call.1} parent=79 // pred_check
          %p547 = pneg %p206
        $region82: #{tpu_custom_call.1} parent=79 // pred_check_branch
          %549 = sbr.rel (%p547) target = $region84
        $region83: #{tpu_custom_call.1} parent=79 // pred_region
          %s550 = sand.u32 %s191, 1
          %s551 = scalar_lea.sflag [#allocation4], %s550
          %s552 = sand.u32 %s191, 1
          %s553 = scalar_lea.vmem [#allocation11], %s552
          %555 = dma.done %s551, 16
        $region84: #{tpu_custom_call.1} parent=79 // pred_fallthru
          _
      $region80: #{tpu_custom_call.1} parent=5 // pred_fallthru
        _
    $region6: #{tpu_custom_call.1} parent=1 // loop_footer
      %s26 = sadd.s32 1, %s22
    $region7: #{tpu_custom_call.1} parent=1 // loop_footer_branch
      %21 = sbr.rel target = $region3
    $region8: #{tpu_custom_call.1} parent=1 // loop_exit
      _
    %556 = vsyncpa [#allocation3], 1
    %s557 = scalar_lea.sflag [#allocation3], 1
    %558 = vsyncpa %s557, 1
    %559 = vsyncpa [#allocation6], 1
    %s560 = scalar_lea.sflag [#allocation6], 1
    %561 = vsyncpa %s560, 1
    %562 = vsyncpa [#allocation9], 1
    %563 = vsyncpa [#allocation4], 1
    %s564 = scalar_lea.sflag [#allocation4], 1
    %565 = vsyncpa %s564, 1

// kernel: tpu_custom_call.1
$region0: #{tpu_custom_call.1}
  #allocation0 [shape = 'u32[]', space=smem, size = 0x4, offset = 0x4, fixed_abs, tag = 'smem constant byte address 0x4 - core index']
  #allocation1 [shape = 'u32[72,128]{1,0:T(1,128)}', space=vmem, size = 0x9000, scoped, tag = 'internal scratch']
  %s0 = inlined_call_operand.hbm [shape: bf16[2,8,32], index: 0, kind: input, shape index: {}]
  %s1 = inlined_call_operand.hbm [shape: f32[2,1,128], index: 1, kind: input, shape index: {}]
  %s2 = inlined_call_operand.hbm [shape: f32[2,1,128], index: 2, kind: input, shape index: {}]
  %s3 = inlined_call_operand.hbm [shape: bf16[32,128], index: 3, kind: input, shape index: {}]
  %s4 = inlined_call_operand.hbm [shape: bf16[128,128], index: 4, kind: input, shape index: {}]
  %s5 = inlined_call_operand.vmem [shape: f32[1,128], index: 5, kind: input, shape index: {}]
  %s6 = inlined_call_operand.hbm [shape: f32[2,1,128], index: 6, kind: output, shape index: {}]
  %s7 = sld [smem:[#allocation0]]
  $region85: #{tpu_custom_call.1} parent=0
    _
  %s9 = ssub.s32 1, %s7
  %s10 = scalar_select 0, %s9, %s7
  $region1: #{tpu_custom_call.1} parent=0
    #allocation2 [shape = 'u8[4096]{0}', space=vmem, size = 0x1000, scoped, tag = 'input window, operand 0']
    #allocation3 [shape = 's32[2]{0}', space=sflag, size = 0x8, scoped, tag = 'scoped memory for tpu_custom_call.1']
    #allocation4 [shape = 's32[2]{0}', space=sflag, size = 0x8, scoped, tag = 'scoped memory for tpu_custom_call.1']
    #allocation5 [shape = 'u8[1024]{0}', space=vmem, size = 0x400, scoped, tag = 'input window, operand 1']
    #allocation6 [shape = 's32[2]{0}', space=sflag, size = 0x8, scoped, tag = 'scoped memory for tpu_custom_call.1']
    #allocation7 [shape = 'u8[1024]{0}', space=vmem, size = 0x400, scoped, tag = 'input window, operand 2']
    #allocation8 [shape = 'u8[8192]{0}', space=vmem, size = 0x2000, scoped, tag = 'input window, operand 3, single buffered']
    #allocation9 [shape = 's32[1]{0}', space=sflag, size = 0x4, scoped, tag = 'scoped memory for tpu_custom_call.1']
    #allocation10 [shape = 'u8[32768]{0}', space=vmem, size = 0x8000, scoped, tag = 'input window, operand 4, single buffered']
    #allocation11 [shape = 'u8[1024]{0}', space=vmem, size = 0x400, scoped, tag = 'output window, operand 0']
    %11 = vsyncpa [#allocation3], 0
    %s12 = scalar_lea.sflag [#allocation3], 1
    %13 = vsyncpa %s12, 0
    %14 = vsyncpa [#allocation6], 0
    %s15 = scalar_lea.sflag [#allocation6], 1
    %16 = vsyncpa %s15, 0
    %17 = vsyncpa [#allocation9], 0
    %18 = vsyncpa [#allocation4], 0
    %s19 = scalar_lea.sflag [#allocation4], 1
    %20 = vsyncpa %s19, 0
    loop: start=0, step=1, limit=4
    $region2: #{tpu_custom_call.1} parent=1 // loop_pre_header
      _
    $region3: #{tpu_custom_call.1} parent=1 // loop_header
      %s22 = sphi 0, %s26
      %p23 = scmp.ge.s32.totalorder %s22, 4
      %s29 = sphi 0, %s41
      %s30 = sphi 0, %s37
      %s31 = sphi 0, %s29
      %s32 = sphi 0, %s30
      %s33 = sphi 0, %s31
      %s34 = sphi 0, %s32
      %s46 = sphi 0, %s48
      %s49 = sphi 0, %s46
      %s50 = sphi 0, %s49
      %s66 = sphi 0, %s50
      %s72 = sphi 0, %s74
      %s75 = sphi 0, %s72
      %s76 = sphi 0, %s75
      %s92 = sphi 0, %s76
      %s98 = sphi 0, %s100
      %s101 = sphi 0, %s98
      %s102 = sphi 0, %s101
      %s118 = sphi 0, %s102
      %s122 = sphi 0, %s122
      %s124 = sphi 0, %s122
      %s125 = sphi 0, %s124
      %s139 = sphi 0, %s125
      %s143 = sphi 0, %s143
      %s145 = sphi 0, %s143
      %s146 = sphi 0, %s145
      %s160 = sphi 0, %s146
      %s164 = sphi 0, %s164
      %s166 = sphi 0, %s164
      %s167 = sphi 0, %s166
      %s181 = sphi 0, %s167
      %s187 = sphi 0, %s189
      %s190 = sphi 0, %s187
      %s191 = sphi 0, %s190
      %s207 = sphi 0, %s191
    $region4: #{tpu_custom_call.1} parent=1 // loop_header_branch
      %25 = sbr.rel (%p23) target = $region8
    $region5: #{tpu_custom_call.1} parent=1 // loop_body
      %s27 = ssub.s32 %s22, 1
      %s28 = ssub.s32 %s22, 2
      %s35 = sadd.s32 1, %s30
      %p36 = scmp.ge.s32.totalorder %s35, 1
      %s37 = scalar_select %p36, 0, %s35
      %s38 = sadd.s32 1, %s29
      %s39 = scalar_select %p36, %s38, %s29
      %p40 = scmp.ge.s32.totalorder %s39, 2
      %s41 = scalar_select %p40, 0, %s39
      %s42 = ssub.s32 %s29, %s41
      %s43 = ssub.s32 %s30, %s37
      %s44 = sor.u32 %s42, %s43
      %p45 = scmp.eq.s32.totalorder %s44, 0
      %s47 = sadd.s32 %s46, 1
      %s48 = scalar_select %p45, %s46, %s47
      %p51 = pneg %p45
      %p52 = scmp.eq.s32.totalorder %s22, 1
      %p53 = por %p51, %p52
      %p54 = scmp.ne.s32.totalorder %s46, %s49
      %p55 = scmp.eq.s32.totalorder %s22, 0
      %p56 = por %p54, %p55
      %p57 = scmp.ne.s32.totalorder %s46, %s49
      %p58 = scmp.eq.s32.totalorder %s27, 1
      %p59 = por %p57, %p58
      %p60 = scmp.ne.s32.totalorder %s49, %s50
      %p61 = scmp.eq.s32.totalorder %s27, 0
      %p62 = por %p60, %p61
      %p63 = scmp.ne.s32.totalorder %s49, %s50
      %p64 = scmp.eq.s32.totalorder %s28, 1
      %p65 = por %p63, %p64
      %p67 = scmp.ne.s32.totalorder %s50, %s66
      %p68 = scmp.eq.s32.totalorder %s28, 0
      %p69 = por %p67, %p68
      %s70 = ssub.s32 %s29, %s41
      %p71 = scmp.eq.s32.totalorder %s70, 0
      %s73 = sadd.s32 %s72, 1
      %s74 = scalar_select %p71, %s72, %s73
      %p77 = pneg %p71
      %p78 = scmp.eq.s32.totalorder %s22, 1
      %p79 = por %p77, %p78
      %p80 = scmp.ne.s32.totalorder %s72, %s75
      %p81 = scmp.eq.s32.totalorder %s22, 0
      %p82 = por %p80, %p81
      %p83 = scmp.ne.s32.totalorder %s72, %s75
      %p84 = scmp.eq.s32.totalorder %s27, 1
      %p85 = por %p83, %p84
      %p86 = scmp.ne.s32.totalorder %s75, %s76
      %p87 = scmp.eq.s32.totalorder %s27, 0
      %p88 = por %p86, %p87
      %p89 = scmp.ne.s32.totalorder %s75, %s76
      %p90 = scmp.eq.s32.totalorder %s28, 1
      %p91 = por %p89, %p90
      %p93 = scmp.ne.s32.totalorder %s76, %s92
      %p94 = scmp.eq.s32.totalorder %s28, 0
      %p95 = por %p93, %p94
      %s96 = ssub.s32 %s29, %s41
      %p97 = scmp.eq.s32.totalorder %s96, 0
      %s99 = sadd.s32 %s98, 1
      %s100 = scalar_select %p97, %s98, %s99
      %p103 = pneg %p97
      %p104 = scmp.eq.s32.totalorder %s22, 1
      %p105 = por %p103, %p104
      %p106 = scmp.ne.s32.totalorder %s98, %s101
      %p107 = scmp.eq.s32.totalorder %s22, 0
      %p108 = por %p106, %p107
      %p109 = scmp.ne.s32.totalorder %s98, %s101
      %p110 = scmp.eq.s32.totalorder %s27, 1
      %p111 = por %p109, %p110
      %p112 = scmp.ne.s32.totalorder %s101, %s102
      %p113 = scmp.eq.s32.totalorder %s27, 0
      %p114 = por %p112, %p113
      %p115 = scmp.ne.s32.totalorder %s101, %s102
      %p116 = scmp.eq.s32.totalorder %s28, 1
      %p117 = por %p115, %p116
      %p119 = scmp.ne.s32.totalorder %s102, %s118
      %p120 = scmp.eq.s32.totalorder %s28, 0
      %p121 = por %p119, %p120
      %s123 = sadd.s32 %s122, 1
      %p126 = scmp.eq.s32.totalorder %s22, 1
      %p127 = scmp.ne.s32.totalorder %s122, %s124
      %p128 = scmp.eq.s32.totalorder %s22, 0
      %p129 = por %p127, %p128
      %p130 = scmp.ne.s32.totalorder %s122, %s124
      %p131 = scmp.eq.s32.totalorder %s27, 1
      %p132 = por %p130, %p131
      %p133 = scmp.ne.s32.totalorder %s124, %s125
      %p134 = scmp.eq.s32.totalorder %s27, 0
      %p135 = por %p133, %p134
      %p136 = scmp.ne.s32.totalorder %s124, %s125
      %p137 = scmp.eq.s32.totalorder %s28, 1
      %p138 = por %p136, %p137
      %p140 = scmp.ne.s32.totalorder %s125, %s139
      %p141 = scmp.eq.s32.totalorder %s28, 0
      %p142 = por %p140, %p141
      %s144 = sadd.s32 %s143, 1
      %p147 = scmp.eq.s32.totalorder %s22, 1
      %p148 = scmp.ne.s32.totalorder %s143, %s145
      %p149 = scmp.eq.s32.totalorder %s22, 0
      %p150 = por %p148, %p149
      %p151 = scmp.ne.s32.totalorder %s143, %s145
      %p152 = scmp.eq.s32.totalorder %s27, 1
      %p153 = por %p151, %p152
      %p154 = scmp.ne.s32.totalorder %s145, %s146
      %p155 = scmp.eq.s32.totalorder %s27, 0
      %p156 = por %p154, %p155
      %p157 = scmp.ne.s32.totalorder %s145, %s146
      %p158 = scmp.eq.s32.totalorder %s28, 1
      %p159 = por %p157, %p158
      %p161 = scmp.ne.s32.totalorder %s146, %s160
      %p162 = scmp.eq.s32.totalorder %s28, 0
      %p163 = por %p161, %p162
      %s165 = sadd.s32 %s164, 1
      %p168 = scmp.eq.s32.totalorder %s22, 1
      %p169 = scmp.ne.s32.totalorder %s164, %s166
      %p170 = scmp.eq.s32.totalorder %s22, 0
      %p171 = por %p169, %p170
      %p172 = scmp.ne.s32.totalorder %s164, %s166
      %p173 = scmp.eq.s32.totalorder %s27, 1
      %p174 = por %p172, %p173
      %p175 = scmp.ne.s32.totalorder %s166, %s167
      %p176 = scmp.eq.s32.totalorder %s27, 0
      %p177 = por %p175, %p176
      %p178 = scmp.ne.s32.totalorder %s166, %s167
      %p179 = scmp.eq.s32.totalorder %s28, 1
      %p180 = por %p178, %p179
      %p182 = scmp.ne.s32.totalorder %s167, %s181
      %p183 = scmp.eq.s32.totalorder %s28, 0
      %p184 = por %p182, %p183
      %s185 = ssub.s32 %s29, %s41
      %p186 = scmp.eq.s32.totalorder %s185, 0
      %s188 = sadd.s32 %s187, 1
      %s189 = scalar_select %p186, %s187, %s188
      %p192 = pneg %p186
      %p193 = scmp.eq.s32.totalorder %s22, 1
      %p194 = por %p192, %p193
      %p195 = scmp.ne.s32.totalorder %s187, %s190
      %p196 = scmp.eq.s32.totalorder %s22, 0
      %p197 = por %p195, %p196
      %p198 = scmp.ne.s32.totalorder %s187, %s190
      %p199 = scmp.eq.s32.totalorder %s27, 1
      %p200 = por %p198, %p199
      %p201 = scmp.ne.s32.totalorder %s190, %s191
      %p202 = scmp.eq.s32.totalorder %s27, 0
      %p203 = por %p201, %p202
      %p204 = scmp.ne.s32.totalorder %s190, %s191
      %p205 = scmp.eq.s32.totalorder %s28, 1
      %p206 = por %p204, %p205
      %p208 = scmp.ne.s32.totalorder %s191, %s207
      %p209 = scmp.eq.s32.totalorder %s28, 0
      %p210 = por %p208, %p209
      %p211 = scmp.le.s32.totalorder 1, %s22
      %p212 = scmp.lt.s32.totalorder %s22, 3
      %p213 = pnand %p211, %p212
      %p214 = pneg %p213
      // Predicated region
      $region9: #{tpu_custom_call.1} parent=5 // pred_check
        _
      $region10: #{tpu_custom_call.1} parent=5 // pred_check_branch
        %216 = sbr.rel (%p213) target = $region12
      $region11: #{tpu_custom_call.1} parent=5 // pred_region
        %s217 = ssub.s32 %s22, 1
        // Predicated region
        $region13: #{tpu_custom_call.1} parent=11 // pred_check
          %p218 = pneg %p135
        $region14: #{tpu_custom_call.1} parent=11 // pred_check_branch
          %220 = sbr.rel (%p218) target = $region16
        $region15: #{tpu_custom_call.1} parent=11 // pred_region
          %222 = vsyncadd [#allocation9], 0
          %s223 = sshll.u32 %s3, 4
          %s224 = int_to_ptr.hbm [resolvable:$true] %s223
          %s225 = sshll.u32 [#allocation8], 4
          %s226 = int_to_ptr.vmem [resolvable:$true] %s225
          %231 = dma.hbm_to_vmem [thread:$0]  %s224, 256, %s226, [#allocation9], 64, 64, 4
        $region16: #{tpu_custom_call.1} parent=11 // pred_fallthru
          _
        // Predicated region
        $region17: #{tpu_custom_call.1} parent=11 // pred_check
          %p232 = pneg %p156
        $region18: #{tpu_custom_call.1} parent=11 // pred_check_branch
          %234 = sbr.rel (%p232) target = $region20
        $region19: #{tpu_custom_call.1} parent=11 // pred_region
          %236 = vsyncadd [#allocation9], 0
          %s237 = sshll.u32 %s4, 4
          %s238 = int_to_ptr.hbm [resolvable:$true] %s237
          %s239 = sshll.u32 [#allocation10], 4
          %s240 = int_to_ptr.vmem [resolvable:$true] %s239
          %245 = dma.hbm_to_vmem [thread:$0]  %s238, 1024, %s240, [#allocation9], 64, 64, 4
        $region20: #{tpu_custom_call.1} parent=11 // pred_fallthru
          _
        // Predicated region
        $region21: #{tpu_custom_call.1} parent=11 // pred_check
          %p246 = pneg %p177
        $region22: #{tpu_custom_call.1} parent=11 // pred_check_branch
          %248 = sbr.rel (%p246) target = $region24
        $region23: #{tpu_custom_call.1} parent=11 // pred_region
          _
        $region24: #{tpu_custom_call.1} parent=11 // pred_fallthru
          _
      $region12: #{tpu_custom_call.1} parent=5 // pred_fallthru
        _
      %p249 = scmp.lt.s32.totalorder %s22, 2
      // Predicated region
      $region25: #{tpu_custom_call.1} parent=5 // pred_check
        %p250 = pneg %p249
      $region26: #{tpu_custom_call.1} parent=5 // pred_check_branch
        %252 = sbr.rel (%p250) target = $region28
      $region27: #{tpu_custom_call.1} parent=5 // pred_region
        // Predicated region
        $region29: #{tpu_custom_call.1} parent=27 // pred_check
          %p253 = pneg %p56
        $region30: #{tpu_custom_call.1} parent=27 // pred_check_branch
          %255 = sbr.rel (%p253) target = $region32
        $region31: #{tpu_custom_call.1} parent=27 // pred_region
          %s256 = sand.u32 %s46, 1
          %s257 = scalar_lea.sflag [#allocation3], %s256
          %s258 = sand.u32 %s46, 1
          %s259 = smul.addr %s258, 4
          %s260 = scalar_lea.vmem [#allocation2], %s259
          %262 = vsyncadd %s257, 0
          %s263 = sadd.s32 %s30, %s29
          %s264 = smul.addr %s263, 4
          %s265 = scalar_lea.hbm %s0, %s264
          %s267 = sshll.u32 %s265, 4
          %s268 = int_to_ptr.hbm [resolvable:$true] %s267
          %s269 = sshll.u32 %s260, 4
          %s270 = int_to_ptr.vmem [resolvable:$true] %s269
          %272 = dma.hbm_to_vmem [thread:$0]  %s268, 64, %s270, %s257
        $region32: #{tpu_custom_call.1} parent=27 // pred_fallthru
          _
        // Predicated region
        $region33: #{tpu_custom_call.1} parent=27 // pred_check
          %p273 = pneg %p82
        $region34: #{tpu_custom_call.1} parent=27 // pred_check_branch
          %275 = sbr.rel (%p273) target = $region36
        $region35: #{tpu_custom_call.1} parent=27 // pred_region
          %s276 = sand.u32 %s22, 1
          %s277 = scalar_lea.sflag [#allocation6], %s276
          %s278 = sand.u32 %s72, 1
          %s279 = scalar_lea.vmem [#allocation5], %s278
          %281 = vsyncadd %s277, 0
          %s282 = scalar_lea.hbm %s1, %s29
          %s284 = sshll.u32 %s282, 4
          %s285 = int_to_ptr.hbm [resolvable:$true] %s284
          %s286 = sshll.u32 %s279, 4
          %s287 = int_to_ptr.vmem [resolvable:$true] %s286
          %289 = dma.hbm_to_vmem [thread:$0]  %s285, 16, %s287, %s277
        $region36: #{tpu_custom_call.1} parent=27 // pred_fallthru
          _
        // Predicated region
        $region37: #{tpu_custom_call.1} parent=27 // pred_check
          %p290 = pneg %p108
        $region38: #{tpu_custom_call.1} parent=27 // pred_check_branch
          %292 = sbr.rel (%p290) target = $region40
        $region39: #{tpu_custom_call.1} parent=27 // pred_region
          %s293 = sand.u32 %s22, 1
          %s294 = scalar_lea.sflag [#allocation6], %s293
          %s295 = sand.u32 %s98, 1
          %s296 = scalar_lea.vmem [#allocation7], %s295
          %298 = vsyncadd %s294, 0
          %s299 = scalar_lea.hbm %s2, %s29
          %s301 = sshll.u32 %s299, 4
          %s302 = int_to_ptr.hbm [resolvable:$true] %s301
          %s303 = sshll.u32 %s296, 4
          %s304 = int_to_ptr.vmem [resolvable:$true] %s303
          %306 = dma.hbm_to_vmem [thread:$0]  %s302, 16, %s304, %s294
        $region40: #{tpu_custom_call.1} parent=27 // pred_fallthru
          _
      $region28: #{tpu_custom_call.1} parent=5 // pred_fallthru
        _
      %p307 = scmp.le.s32.totalorder 1, %s22
      %p308 = scmp.lt.s32.totalorder %s22, 3
      %p309 = pnand %p307, %p308
      %p310 = pneg %p309
      // Predicated region
      $region41: #{tpu_custom_call.1} parent=5 // pred_check
        _
      $region42: #{tpu_custom_call.1} parent=5 // pred_check_branch
        %312 = sbr.rel (%p309) target = $region44
      $region43: #{tpu_custom_call.1} parent=5 // pred_region
        %s313 = ssub.s32 %s22, 1
        %s314 = sand.u32 %s49, 1
        %s315 = scalar_lea.sflag [#allocation3], %s314
        %s316 = sand.u32 %s49, 1
        %s317 = smul.addr %s316, 4
        %s318 = scalar_lea.vmem [#allocation2], %s317
        // Predicated region
        $region45: #{tpu_custom_call.1} parent=43 // pred_check
          %p319 = pneg %p62
        $region46: #{tpu_custom_call.1} parent=43 // pred_check_branch
          %321 = sbr.rel (%p319) target = $region48
        $region47: #{tpu_custom_call.1} parent=43 // pred_region
          %323 = dma.done %s315, 64
        $region48: #{tpu_custom_call.1} parent=43 // pred_fallthru
          _
        %s324 = sand.u32 %s27, 1
        %s325 = scalar_lea.sflag [#allocation6], %s324
        %s326 = sand.u32 %s75, 1
        %s327 = scalar_lea.vmem [#allocation5], %s326
        // Predicated region
        $region49: #{tpu_custom_call.1} parent=43 // pred_check
          %p328 = pneg %p88
        $region50: #{tpu_custom_call.1} parent=43 // pred_check_branch
          %330 = sbr.rel (%p328) target = $region52
        $region51: #{tpu_custom_call.1} parent=43 // pred_region
          %332 = dma.done %s325, 16
        $region52: #{tpu_custom_call.1} parent=43 // pred_fallthru
          _
        %s333 = sand.u32 %s27, 1
        %s334 = scalar_lea.sflag [#allocation6], %s333
        %s335 = sand.u32 %s101, 1
        %s336 = scalar_lea.vmem [#allocation7], %s335
        // Predicated region
        $region53: #{tpu_custom_call.1} parent=43 // pred_check
          %p337 = pneg %p114
        $region54: #{tpu_custom_call.1} parent=43 // pred_check_branch
          %339 = sbr.rel (%p337) target = $region56
        $region55: #{tpu_custom_call.1} parent=43 // pred_region
          %341 = dma.done %s334, 16
        $region56: #{tpu_custom_call.1} parent=43 // pred_fallthru
          _
        // Predicated region
        $region57: #{tpu_custom_call.1} parent=43 // pred_check
          %p342 = pneg %p135
        $region58: #{tpu_custom_call.1} parent=43 // pred_check_branch
          %344 = sbr.rel (%p342) target = $region60
        $region59: #{tpu_custom_call.1} parent=43 // pred_region
          %346 = dma.done [#allocation9], 256
        $region60: #{tpu_custom_call.1} parent=43 // pred_fallthru
          _
        // Predicated region
        $region61: #{tpu_custom_call.1} parent=43 // pred_check
          %p347 = pneg %p156
        $region62: #{tpu_custom_call.1} parent=43 // pred_check_branch
          %349 = sbr.rel (%p347) target = $region64
        $region63: #{tpu_custom_call.1} parent=43 // pred_region
          %351 = dma.done [#allocation9], 1024
        $region64: #{tpu_custom_call.1} parent=43 // pred_fallthru
          _
        %s352 = sand.u32 %s49, 1
        %s353 = scalar_lea.sflag [#allocation3], %s352
        %s354 = sand.u32 %s49, 1
        %s355 = smul.addr %s354, 4
        %s356 = scalar_lea.vmem [#allocation2], %s355
        %p357 = pneg %p62
        %p358 = pneg %p59
        %s359 = sand.u32 %s27, 1
        %s360 = scalar_lea.sflag [#allocation6], %s359
        %s361 = sand.u32 %s75, 1
        %s362 = scalar_lea.vmem [#allocation5], %s361
        %p363 = pneg %p88
        %p364 = pneg %p85
        %s365 = sand.u32 %s27, 1
        %s366 = scalar_lea.sflag [#allocation6], %s365
        %s367 = sand.u32 %s101, 1
        %s368 = scalar_lea.vmem [#allocation7], %s367
        %p369 = pneg %p114
        %p370 = pneg %p111
        %p371 = pneg %p135
        %p372 = pneg %p132
        %p373 = pneg %p156
        %p374 = pneg %p153
        %p375 = pneg %p177
        %p376 = pneg %p174
        %p377 = pneg %p203
        %p378 = pneg %p200
        %s379 = sand.u32 %s190, 1
        %s380 = scalar_lea.sflag [#allocation4], %s379
        %s381 = sand.u32 %s190, 1
        %s382 = scalar_lea.vmem [#allocation11], %s381
        %p384 = scmp.eq.s32.totalorder %s32, 0
        // Predicated region
        $region65: #{tpu_custom_call.1} parent=43 // pred_check
          %p385 = pneg %p384
        $region66: #{tpu_custom_call.1} parent=43 // pred_check_branch
          %387 = sbr.rel (%p385) target = $region68
        $region67: #{tpu_custom_call.1} parent=43 // pred_region
          %388 = vst [vmem:[%s382] sm:$0x1] -inf
        $region68: #{tpu_custom_call.1} parent=43 // pred_fallthru
          _
        %v389 = vld [vmem:[%s318] sm:$0xf]
        %v390 = vld [vmem:[#allocation8] sm:$0xf]
        %v391 = vld [vmem:[#allocation8 + $0x4] sm:$0xf]
        %v392 = vld [vmem:[#allocation8 + $0x8] sm:$0xf]
        %v393 = vld [vmem:[#allocation8 + $0xc] sm:$0xf]
        %v394 = vld [vmem:[%s327] sm:$0x1]
        %v396 = vperm.slane %v394, 0
        %v402 = vunpack.c.l.b16 %v390
        %v403 = vunpack.c.l.b16 %v391
        %v404 = vunpack.c.l.b16 %v392
        %v405 = vunpack.c.l.b16 %v393
        %v406 = vpack.c.b16 %v403, %v402
        %v407 = vpack.c.b16 %v405, %v404
        %vm410 = vcmask 261120
        %v412 = vsel %vm410, %v389, 0
        %414 = vmatpush.bf16.msra.mxu0 0
        %415 = vmatpush.bf16.msra.mxu0 0
        %416 = vmatpush.bf16.msra.mxu0 0
        %417 = vmatpush.bf16.msra.mxu0 0
        %418 = vmatpush.bf16.msra.mxu0 0
        %419 = vmatpush.bf16.msra.mxu0 0
        %420 = vmatpush.bf16.msra.mxu0 %v407
        %421 = vmatpush.bf16.msra.mxu0 %v406
        %422 = vmatmul.bf16.gmra.mxu0 %v412
        %v423 = vpop.f32.mrf.mxu0
        %v424 = vadd.f32 %v396, %v423
        %v425 = vpop.f32.mrf.mxu0
        %426 = vdwg.mxu0
        %v427 = vmax.f32 %v424, 0.0
        %v428 = vpack.c.bf16 %v427, %v427
        %v429 = vld [vmem:[#allocation10] sm:$0xf]
        %v430 = vld [vmem:[#allocation10 + $0x4] sm:$0xf]
        %v431 = vld [vmem:[#allocation10 + $0x8] sm:$0xf]
        %v432 = vld [vmem:[#allocation10 + $0xc] sm:$0xf]
        %v433 = vld [vmem:[#allocation10 + $0x10] sm:$0xf]
        %v434 = vld [vmem:[#allocation10 + $0x14] sm:$0xf]
        %v435 = vld [vmem:[#allocation10 + $0x18] sm:$0xf]
        %v436 = vld [vmem:[#allocation10 + $0x1c] sm:$0xf]
        %v437 = vld [vmem:[#allocation10 + $0x20] sm:$0xf]
        %v438 = vld [vmem:[#allocation10 + $0x24] sm:$0xf]
        %v439 = vld [vmem:[#allocation10 + $0x28] sm:$0xf]
        %v440 = vld [vmem:[#allocation10 + $0x2c] sm:$0xf]
        %v441 = vld [vmem:[#allocation10 + $0x30] sm:$0xf]
        %v442 = vld [vmem:[#allocation10 + $0x34] sm:$0xf]
        %v443 = vld [vmem:[#allocation10 + $0x38] sm:$0xf]
        %v444 = vld [vmem:[#allocation10 + $0x3c] sm:$0xf]
        %v461 = vunpack.c.l.b16 %v429
        %v462 = vunpack.c.l.b16 %v430
        %v463 = vunpack.c.l.b16 %v431
        %v464 = vunpack.c.l.b16 %v432
        %v465 = vunpack.c.l.b16 %v433
        %v466 = vunpack.c.l.b16 %v434
        %v467 = vunpack.c.l.b16 %v435
        %v468 = vunpack.c.l.b16 %v436
        %v469 = vunpack.c.l.b16 %v437
        %v470 = vunpack.c.l.b16 %v438
        %v471 = vunpack.c.l.b16 %v439
        %v472 = vunpack.c.l.b16 %v440
        %v473 = vunpack.c.l.b16 %v441
        %v474 = vunpack.c.l.b16 %v442
        %v475 = vunpack.c.l.b16 %v443
        %v476 = vunpack.c.l.b16 %v444
        %v477 = vpack.c.b16 %v462, %v461
        %v478 = vpack.c.b16 %v464, %v463
        %v479 = vpack.c.b16 %v466, %v465
        %v480 = vpack.c.b16 %v468, %v467
        %v481 = vpack.c.b16 %v470, %v469
        %v482 = vpack.c.b16 %v472, %v471
        %v483 = vpack.c.b16 %v474, %v473
        %v484 = vpack.c.b16 %v476, %v475
        %493 = vmatpush.bf16.msra.mxu0 %v484
        %494 = vmatpush.bf16.msra.mxu0 %v483
        %495 = vmatpush.bf16.msra.mxu0 %v482
        %496 = vmatpush.bf16.msra.mxu0 %v481
        %497 = vmatpush.bf16.msra.mxu0 %v480
        %498 = vmatpush.bf16.msra.mxu0 %v479
        %499 = vmatpush.bf16.msra.mxu0 %v478
        %500 = vmatpush.bf16.msra.mxu0 %v477
        %501 = vmatmul.bf16.gmra.mxu0 %v428
        %v502 = vpop.f32.mrf.mxu0
        %v503 = vadd.f32 0.0, %v502
        %v504 = vpop.f32.mrf.mxu0
        %505 = vdwg.mxu0
        %v506 = vld [vmem:[%s382] sm:$0x1]
        %v507 = vrot.slane %v503, 4
        %v508 = vmax.f32 %v503, %v507
        %v509 = vrot.slane %v508, 2
        %v510 = vmax.f32 %v508, %v509
        %v511 = vrot.slane %v510, 1
        %v512 = vmax.f32 %v510, %v511
        %v513 = vmax.f32 %v506, %v512
        %514 = vst [vmem:[%s382] sm:$0x1] %v513
        // Predicated region
        $region69: #{tpu_custom_call.1} parent=43 // pred_check
          %p515 = pneg %p384
        $region70: #{tpu_custom_call.1} parent=43 // pred_check_branch
          %517 = sbr.rel (%p515) target = $region72
        $region71: #{tpu_custom_call.1} parent=43 // pred_region
          %v518 = vld [vmem:[%s382] sm:$0x1]
          %v519 = vld [vmem:[%s5] sm:$0x1]
          %v520 = vadd.f32 %v518, %v519
          %v521 = vld [vmem:[%s336] sm:$0x1]
          %vm522 = vcmp.gt.f32.partialorder %v521, 0.5
          %v523 = vsel %vm522, -inf, %v520
          %524 = vst [vmem:[%s382] sm:$0x1] %v523
        $region72: #{tpu_custom_call.1} parent=43 // pred_fallthru
          _
        %s525 = sand.u32 %s190, 1
        %s526 = scalar_lea.sflag [#allocation4], %s525
        %s527 = sand.u32 %s190, 1
        %s528 = scalar_lea.vmem [#allocation11], %s527
        // Predicated region
        $region73: #{tpu_custom_call.1} parent=43 // pred_check
          %p529 = pneg %p200
        $region74: #{tpu_custom_call.1} parent=43 // pred_check_branch
          %531 = sbr.rel (%p529) target = $region76
        $region75: #{tpu_custom_call.1} parent=43 // pred_region
          %533 = vsyncadd %s526, 0
          %s534 = scalar_lea.hbm %s6, %s31
          %s536 = sshll.u32 %s528, 4
          %s537 = int_to_ptr.vmem [resolvable:$true] %s536
          %s538 = sshll.u32 %s534, 4
          %s539 = int_to_ptr.hbm [resolvable:$true] %s538
          %541 = dma.vmem_to_hbm [thread:$0]  %s537, 16, %s539, %s526
        $region76: #{tpu_custom_call.1} parent=43 // pred_fallthru
          _
      $region44: #{tpu_custom_call.1} parent=5 // pred_fallthru
        _
      %p542 = scmp.le.s32.totalorder 2, %s22
      // Predicated region
      $region77: #{tpu_custom_call.1} parent=5 // pred_check
        %p543 = pneg %p542
      $region78: #{tpu_custom_call.1} parent=5 // pred_check_branch
        %545 = sbr.rel (%p543) target = $region80
      $region79: #{tpu_custom_call.1} parent=5 // pred_region
        %s546 = ssub.s32 %s22, 2
        // Predicated region
        $region81: #{tpu_custom_call.1} parent=79 // pred_check
          %p547 = pneg %p206
        $region82: #{tpu_custom_call.1} parent=79 // pred_check_branch
          %549 = sbr.rel (%p547) target = $region84
        $region83: #{tpu_custom_call.1} parent=79 // pred_region
          %s550 = sand.u32 %s191, 1
          %s551 = scalar_lea.sflag [#allocation4], %s550
          %s552 = sand.u32 %s191, 1
          %s553 = scalar_lea.vmem [#allocation11], %s552
          %555 = dma.done %s551, 16
        $region84: #{tpu_custom_call.1} parent=79 // pred_fallthru
          _
      $region80: #{tpu_custom_call.1} parent=5 // pred_fallthru
        _
    $region6: #{tpu_custom_call.1} parent=1 // loop_footer
      %s26 = sadd.s32 1, %s22
    $region7: #{tpu_custom_call.1} parent=1 // loop_footer_branch
      %21 = sbr.rel target = $region3
    $region8: #{tpu_custom_call.1} parent=1 // loop_exit
      _
    %556 = vsyncpa [#allocation3], 1
    %s557 = scalar_lea.sflag [#allocation3], 1
    %558 = vsyncpa %s557, 1
    %559 = vsyncpa [#allocation6], 1
    %s560 = scalar_lea.sflag [#allocation6], 1
    %561 = vsyncpa %s560, 1
    %562 = vsyncpa [#allocation9], 1
    %563 = vsyncpa [#allocation4], 1
    %s564 = scalar_lea.sflag [#allocation4], 1
    %565 = vsyncpa %s564, 1

</llo_original>
